<compile_context>
chip_gen: v7x
topology: tpu7x:2x2x1
jax: 0.10.0
libtpu: 0.0.40
codegen_flags: <defaults>
</compile_context>

<pallas_src>
import functools

import jax
import jax.numpy as jnp
from jax.experimental import pallas as pl
from jax.experimental.pallas import tpu as pltpu


_LANE = 128
_SUBLANE = 8
_MAX_BATCH_TILE = 256   # nominal tile cap (MXU height on v6e/v7x)
_EVEN_TILE_CAP = 320    # allow TB up to this when it buys an even tile count (v7x)


def _round_up(x, m):
    return ((x + m - 1) // m) * m


def _pad_to(a, shape):
    pads = [(0, t - s) for s, t in zip(a.shape, shape)]
    if not any(p for _, p in pads):
        return a
    return jnp.pad(a, pads)


def _choose_batch_tiling(B):
    """Pick (TB, n_tiles) so B_pad barely exceeds B; prefer an even tile count
    (v7x megacore splits the 'parallel' batch axis across 2 TensorCores)."""
    n_tiles = -(-B // _MAX_BATCH_TILE)
    if n_tiles > 1 and n_tiles % 2 == 1:
        tb_even = _round_up(-(-B // (n_tiles - 1)), _SUBLANE)
        if tb_even <= _EVEN_TILE_CAP:
            n_tiles -= 1
    TB = _round_up(-(-B // n_tiles), _SUBLANE)
    return TB, n_tiles


def _nchannel_kernel(
    x_ref,      # (TB, N*F)          f32
    w0_ref,     # (N, N*F, Hp)       bf16  per-channel first layer, embedded in full width
    b0_ref,     # (N, 1, Hp)         f32
    wh_ref,     # (N, L, Hp, Hp)     bf16
    bh_ref,     # (N, L, 1, Hp)      f32
    wc_ref,     # (N, Hp, Hp)        bf16  fused wf[c] @ fw0[c]
    bc_ref,     # (1, Hp)            f32   fused fb0 + sum_c bf[c] @ fw0[c]
    fwh_ref,    # (Lf, Hp, Hp)       bf16
    fbh_ref,    # (Lf, 1, Hp)        f32
    fwf_ref,    # (Hp, Cp)           bf16
    fbf_ref,    # (1, Cp)            f32
    out_ref,    # (TB, Cp)           f32
    acc_ref,    # VMEM scratch (TB, Hp) f32 -- channel-sum accumulator
):
    N = w0_ref.shape[0]
    L = wh_ref.shape[1]
    Lf = fwh_ref.shape[0]

    x_bf = x_ref[...].astype(jnp.bfloat16)   # (TB, N*F), cast once

    # Per-channel DenseEmbedding (static unroll). Channel-major keeps only one
    # (TB, Hp) activation live at a time; the single basic block still exposes
    # the N independent MXU chains to the LLO scheduler.
    for c in range(N):
        h = jnp.dot(x_bf, w0_ref[c, :, :],
                    preferred_element_type=jnp.float32) + b0_ref[c, :, :]
        h = jnp.maximum(h, 0.0)
        for l in range(L):
            h = jnp.dot(h.astype(jnp.bfloat16), wh_ref[c, l, :, :],
                        preferred_element_type=jnp.float32) + bh_ref[c, l, :, :]
            h = jnp.maximum(h, 0.0)
        # Fused: (h @ wf[c] + bf[c]) @ fw0[c]  ==  h @ wc[c]  (+ bias folded into bc).
        contrib = jnp.dot(h.astype(jnp.bfloat16), wc_ref[c, :, :],
                          preferred_element_type=jnp.float32)
        if c == 0:
            acc_ref[...] = contrib          # init from first channel (no zero-fill)
        else:
            acc_ref[...] += contrib

    # Final DenseEmbedding MLP (first layer's matmul already absorbed above).
    h = jnp.maximum(acc_ref[...] + bc_ref[...], 0.0)
    for l in range(Lf):
        h = jnp.dot(h.astype(jnp.bfloat16), fwh_ref[l, :, :],
                    preferred_element_type=jnp.float32) + fbh_ref[l, :, :]
        h = jnp.maximum(h, 0.0)
    out = jnp.dot(h.astype(jnp.bfloat16), fwf_ref[...],
                  preferred_element_type=jnp.float32) + fbf_ref[...]
    # Outer NChannelDenseEmbedding applies relu after the final DenseEmbedding.
    out_ref[...] = jnp.maximum(out, 0.0)


def _resident_spec(shape):
    """Full-array block with a constant index_map: stays VMEM-resident."""
    zeros = (0,) * len(shape)
    return pl.BlockSpec(shape, lambda i, _z=zeros: _z)


@functools.partial(jax.jit, static_argnames=("context_dim",))
def nchannel_dense_embedding(x, params, *, context_dim):
    """x: (B, N, in_features) f32, params from prepare_params -> (B, context_dim) f32."""
    B, N, F = x.shape
    NF = N * F
    Hp = params["bc"].shape[-1]
    Cp = params["fbf"].shape[-1]
    L = params["wh"].shape[1]
    Lf = params["fwh"].shape[0]

    TB, n_tiles = _choose_batch_tiling(B)
    B_pad = TB * n_tiles

    x_flat = x.reshape(B, NF)                 # free contiguous reshape, lane-dense
    x_pad = _pad_to(x_flat, (B_pad, NF))

    weight_args = (
        params["w0"], params["b0"],
        params["wh"], params["bh"],
        params["wc"], params["bc"],
        params["fwh"], params["fbh"],
        params["fwf"], params["fbf"],
    )

    # Advisory cost estimate so XLA can schedule around the custom call.
    flops = 2 * B_pad * (
        N * (NF * Hp + L * Hp * Hp + Hp * Hp)
        + Lf * Hp * Hp + Hp * Cp)
    bytes_accessed = (
        x_pad.size * x_pad.dtype.itemsize
        + B_pad * Cp * 4
        + sum(a.size * a.dtype.itemsize for a in weight_args))

    out = pl.pallas_call(
        _nchannel_kernel,
        out_shape=jax.ShapeDtypeStruct((B_pad, Cp), jnp.float32),
        grid=(n_tiles,),
        in_specs=[pl.BlockSpec((TB, NF), lambda i: (i, 0))]
                 + [_resident_spec(a.shape) for a in weight_args],
        out_specs=pl.BlockSpec((TB, Cp), lambda i: (i, 0)),
        scratch_shapes=[pltpu.VMEM((TB, Hp), jnp.float32)],
        compiler_params=pltpu.CompilerParams(
            dimension_semantics=("parallel",)),
        cost_estimate=pl.CostEstimate(
            flops=int(flops),
            transcendentals=0,
            bytes_accessed=int(bytes_accessed)),
    )(x_pad, *weight_args)

    return out[:B, :context_dim]


def prepare_params(p):
    """One-time prep: embed the per-channel first layer into the full N*F width,
    fuse the activation-free (wf -> fw0) pair per channel, zero-pad hidden/context
    lane dims to 128 (exact math) and cast matmul weights to bf16 (biases f32)."""
    N, F, H = p["w0"].shape
    C = p["wf"].shape[-1]
    L = p["wh"].shape[1]
    Lf = p["fwh"].shape[0]
    Hp = _round_up(H, _LANE)
    Cp = _round_up(C, _LANE)
    NF = N * F
    bf16 = jnp.bfloat16
    hi = jax.lax.Precision.HIGHEST

    # Per-channel first layer embedded into the flattened (N*F) width so the
    # kernel needs no lane slicing of x: zero rows outside the channel's slice.
    w0f = jnp.zeros((N, NF, H), jnp.float32)
    for c in range(N):
        w0f = w0f.at[c, c * F:(c + 1) * F, :].set(p["w0"][c])

    # Exact fusion of the activation-free pair: wc[c] = wf[c] @ fw0[c] (f32 -> bf16),
    # bc = fb0 + sum_c bf[c] @ fw0[c].
    wc = jnp.einsum("nhc,nck->nhk", p["wf"], p["fw0"], precision=hi)       # (N, H, H)
    bc = p["fb0"] + jnp.einsum("nc,nch->h", p["bf"][:, 0, :], p["fw0"],
                               precision=hi)[None, :]                       # (1, H)

    return {
        "w0":  _pad_to(w0f, (N, NF, Hp)).astype(bf16),
        "b0":  _pad_to(p["b0"], (N, 1, Hp)),
        "wh":  _pad_to(p["wh"], (N, L, Hp, Hp)).astype(bf16),
        "bh":  _pad_to(p["bh"], (N, L, 1, Hp)),
        "wc":  _pad_to(wc, (N, Hp, Hp)).astype(bf16),
        "bc":  _pad_to(bc, (1, Hp)),
        "fwh": _pad_to(p["fwh"], (Lf, Hp, Hp)).astype(bf16),
        "fbh": _pad_to(p["fbh"], (Lf, 1, Hp)),
        "fwf": _pad_to(p["fwf"], (Hp, Cp)).astype(bf16),
        "fbf": _pad_to(p["fbf"], (1, Cp)),
    }


def init_params(key, n_ifos, in_features, context_dim,
                hidden=100, num_hidden=3):
    """Deterministic synthetic init mimicking nn.Linear's U(-1/sqrt(fan_in), ..)."""
    def lin(k, fan_in, shape):
        bound = 1.0 / jnp.sqrt(jnp.float32(fan_in))
        return jax.random.uniform(k, shape, jnp.float32, -bound, bound)

    keys = iter(jax.random.split(key, 32))
    p = {}
    # Per-channel DenseEmbedding(in_features -> context_dim), stacked on axis 0.
    p["w0"] = lin(next(keys), in_features, (n_ifos, in_features, hidden))
    p["b0"] = lin(next(keys), in_features, (n_ifos, 1, hidden))
    p["wh"] = lin(next(keys), hidden, (n_ifos, num_hidden, hidden, hidden))
    p["bh"] = lin(next(keys), hidden, (n_ifos, num_hidden, 1, hidden))
    p["wf"] = lin(next(keys), hidden, (n_ifos, hidden, context_dim))
    p["bf"] = lin(next(keys), hidden, (n_ifos, 1, context_dim))
    # Final DenseEmbedding(n_ifos*context_dim -> context_dim).
    # First-layer weight stored split per channel: (N, C, H) == reshape of (N*C, H).
    p["fw0"] = lin(next(keys), n_ifos * context_dim, (n_ifos, context_dim, hidden))
    p["fb0"] = lin(next(keys), n_ifos * context_dim, (1, hidden))
    p["fwh"] = lin(next(keys), hidden, (num_hidden, hidden, hidden))
    p["fbh"] = lin(next(keys), hidden, (num_hidden, 1, hidden))
    p["fwf"] = lin(next(keys), hidden, (hidden, context_dim))
    p["fbf"] = lin(next(keys), hidden, (1, context_dim))
    return p


def reference(x, p):
    """Pure-JAX f32 reference reproducing the PyTorch forward verbatim (with concat)."""
    B, N, _ = x.shape
    embs = []
    for c in range(N):
        h = jnp.maximum(x[:, c, :] @ p["w0"][c] + p["b0"][c, 0], 0.0)
        for l in range(p["wh"].shape[1]):
            h = jnp.maximum(h @ p["wh"][c, l] + p["bh"][c, l, 0], 0.0)
        embs.append(h @ p["wf"][c] + p["bf"][c, 0])
    xc = jnp.concatenate(embs, axis=1)                      # (B, N*C)
    fw0_flat = p["fw0"].reshape(-1, p["fw0"].shape[-1])     # (N*C, H)
    h = jnp.maximum(xc @ fw0_flat + p["fb0"][0], 0.0)
    for l in range(p["fwh"].shape[0]):
        h = jnp.maximum(h @ p["fwh"][l] + p["fbh"][l, 0], 0.0)
    return jnp.maximum(h @ p["fwf"] + p["fbf"][0], 0.0)


if __name__ == "__main__":
    N_IFOS, IN_FEATURES, CONTEXT_DIM = 3, 16, 8

    key = jax.random.PRNGKey(0)
    kx, kp, kx2 = jax.random.split(key, 3)
    params = init_params(kp, N_IFOS, IN_FEATURES, CONTEXT_DIM)
    prepped = prepare_params(params)

    # Small batch (module's nominal use): single tile, TB=8.
    B = 2
    x = jax.random.normal(kx, (B, N_IFOS, IN_FEATURES), dtype=jnp.float32)
    out = jax.block_until_ready(
        nchannel_dense_embedding(x, prepped, context_dim=CONTEXT_DIM))
    ref = jax.block_until_ready(reference(x, params))
    assert out.shape == (B, CONTEXT_DIM), out.shape
    # bf16 matmuls + wf@fw0 fusion + concat->per-channel-sum fold change rounding
    # vs the f32 reference; 5e-2 tolerance covers the accumulated bf16 error.
    assert jnp.allclose(out, ref, rtol=5e-2, atol=5e-2), (
        f"max abs err {jnp.max(jnp.abs(out - ref))}")

    # Larger batch: exercises adaptive tiling (520 -> 2 tiles of 264, only 8
    # padded rows) and the even tile count preferred for v7x megacore.
    B2 = 520
    x2 = jax.random.normal(kx2, (B2, N_IFOS, IN_FEATURES), dtype=jnp.float32)
    out2 = jax.block_until_ready(
        nchannel_dense_embedding(x2, prepped, context_dim=CONTEXT_DIM))
    ref2 = jax.block_until_ready(reference(x2, params))
    assert out2.shape == (B2, CONTEXT_DIM), out2.shape
    assert jnp.allclose(out2, ref2, rtol=5e-2, atol=5e-2), (
        f"max abs err {jnp.max(jnp.abs(out2 - ref2))}")

    print("KERNEL_OK")
</pallas_src>

<mosaic_0001>
module attributes {stable_mosaic.version = 11 : i64} {
  func.func @_nchannel_kernel(%arg0: i32, %arg1: memref<8x48xf32, #tpu.memory_space<vmem>>, %arg2: memref<3x48x128xbf16, #tpu.memory_space<vmem>>, %arg3: memref<3x1x128xf32, #tpu.memory_space<vmem>>, %arg4: memref<3x3x128x128xbf16, #tpu.memory_space<vmem>>, %arg5: memref<3x3x1x128xf32, #tpu.memory_space<vmem>>, %arg6: memref<3x128x128xbf16, #tpu.memory_space<vmem>>, %arg7: memref<1x128xf32, #tpu.memory_space<vmem>>, %arg8: memref<3x128x128xbf16, #tpu.memory_space<vmem>>, %arg9: memref<3x1x128xf32, #tpu.memory_space<vmem>>, %arg10: memref<128x128xbf16, #tpu.memory_space<vmem>>, %arg11: memref<1x128xf32, #tpu.memory_space<vmem>>, %arg12: memref<8x128xf32, #tpu.memory_space<vmem>>, %arg13: memref<8x128xf32, #tpu.memory_space<vmem>>) attributes {dimension_semantics = [#tpu.dimension_semantics<parallel>], iteration_bounds = array<i64: 1>, scalar_prefetch = 0 : i64, scratch_operands = 1 : i64, tpu.core_type = #tpu.core_type<tc>, window_params = [{transform_indices = @transform_0, window_bounds = array<i64: 8, 48>}, {pipeline_mode = #tpu.pipeline_mode<synchronous>, transform_indices = @transform_1, window_bounds = array<i64: 3, 48, 128>}, {pipeline_mode = #tpu.pipeline_mode<synchronous>, transform_indices = @transform_2, window_bounds = array<i64: 3, 1, 128>}, {pipeline_mode = #tpu.pipeline_mode<synchronous>, transform_indices = @transform_3, window_bounds = array<i64: 3, 3, 128, 128>}, {pipeline_mode = #tpu.pipeline_mode<synchronous>, transform_indices = @transform_4, window_bounds = array<i64: 3, 3, 1, 128>}, {pipeline_mode = #tpu.pipeline_mode<synchronous>, transform_indices = @transform_5, window_bounds = array<i64: 3, 128, 128>}, {pipeline_mode = #tpu.pipeline_mode<synchronous>, transform_indices = @transform_6, window_bounds = array<i64: 1, 128>}, {pipeline_mode = #tpu.pipeline_mode<synchronous>, transform_indices = @transform_7, window_bounds = array<i64: 3, 128, 128>}, {pipeline_mode = #tpu.pipeline_mode<synchronous>, transform_indices = @transform_8, window_bounds = array<i64: 3, 1, 128>}, {pipeline_mode = #tpu.pipeline_mode<synchronous>, transform_indices = @transform_9, window_bounds = array<i64: 128, 128>}, {pipeline_mode = #tpu.pipeline_mode<synchronous>, transform_indices = @transform_10, window_bounds = array<i64: 1, 128>}, {transform_indices = @transform_11, window_bounds = array<i64: 8, 128>}]} {
    %c0 = arith.constant 0 : index
    %c0_0 = arith.constant 0 : index
    %0 = vector.load %arg1[%c0, %c0_0] : memref<8x48xf32, #tpu.memory_space<vmem>>, vector<8x48xf32>
    %1 = arith.truncf %0 : vector<8x48xf32> to vector<8x48xbf16>
    %c0_1 = arith.constant 0 : index
    %c0_2 = arith.constant 0 : index
    %c0_3 = arith.constant 0 : index
    %2 = vector.load %arg2[%c0_1, %c0_2, %c0_3] : memref<3x48x128xbf16, #tpu.memory_space<vmem>>, vector<1x48x128xbf16>
    %3 = vector.shape_cast %2 : vector<1x48x128xbf16> to vector<48x128xbf16>
    %cst = arith.constant dense<0.000000e+00> : vector<8x128xf32>
    %4 = tpu.matmul %1, %3, %cst {dimension_numbers = #tpu.dot_dimension_numbers<[1], [0], [0], [1], [0, 0, 1, 1], [], []>} : vector<8x48xbf16>, vector<48x128xbf16>, vector<8x128xf32> -> vector<8x128xf32>
    %c0_4 = arith.constant 0 : index
    %c0_5 = arith.constant 0 : index
    %c0_6 = arith.constant 0 : index
    %5 = vector.load %arg3[%c0_4, %c0_5, %c0_6] : memref<3x1x128xf32, #tpu.memory_space<vmem>>, vector<1x1x128xf32>
    %6 = vector.shape_cast %5 : vector<1x1x128xf32> to vector<1x128xf32>
    %7 = vector.broadcast %6 : vector<1x128xf32> to vector<8x128xf32>
    %8 = arith.addf %4, %7 : vector<8x128xf32>
    %cst_7 = arith.constant 0.000000e+00 : f32
    %9 = vector.broadcast %cst_7 : f32 to vector<8x128xf32>
    %10 = arith.maximumf %8, %9 : vector<8x128xf32>
    %11 = arith.truncf %10 : vector<8x128xf32> to vector<8x128xbf16>
    %c0_8 = arith.constant 0 : index
    %c0_9 = arith.constant 0 : index
    %c0_10 = arith.constant 0 : index
    %c0_11 = arith.constant 0 : index
    %12 = vector.load %arg4[%c0_8, %c0_9, %c0_10, %c0_11] : memref<3x3x128x128xbf16, #tpu.memory_space<vmem>>, vector<1x1x128x128xbf16>
    %13 = vector.shape_cast %12 : vector<1x1x128x128xbf16> to vector<128x128xbf16>
    %cst_12 = arith.constant dense<0.000000e+00> : vector<8x128xf32>
    %14 = tpu.matmul %11, %13, %cst_12 {dimension_numbers = #tpu.dot_dimension_numbers<[1], [0], [0], [1], [0, 0, 1, 1], [], []>} : vector<8x128xbf16>, vector<128x128xbf16>, vector<8x128xf32> -> vector<8x128xf32>
    %c0_13 = arith.constant 0 : index
    %c0_14 = arith.constant 0 : index
    %c0_15 = arith.constant 0 : index
    %c0_16 = arith.constant 0 : index
    %15 = vector.load %arg5[%c0_13, %c0_14, %c0_15, %c0_16] : memref<3x3x1x128xf32, #tpu.memory_space<vmem>>, vector<1x1x1x128xf32>
    %16 = vector.shape_cast %15 : vector<1x1x1x128xf32> to vector<1x128xf32>
    %17 = vector.broadcast %16 : vector<1x128xf32> to vector<8x128xf32>
    %18 = arith.addf %14, %17 : vector<8x128xf32>
    %cst_17 = arith.constant 0.000000e+00 : f32
    %19 = vector.broadcast %cst_17 : f32 to vector<8x128xf32>
    %20 = arith.maximumf %18, %19 : vector<8x128xf32>
    %21 = arith.truncf %20 : vector<8x128xf32> to vector<8x128xbf16>
    %c0_18 = arith.constant 0 : index
    %c1 = arith.constant 1 : index
    %c0_19 = arith.constant 0 : index
    %c0_20 = arith.constant 0 : index
    %22 = vector.load %arg4[%c0_18, %c1, %c0_19, %c0_20] : memref<3x3x128x128xbf16, #tpu.memory_space<vmem>>, vector<1x1x128x128xbf16>
    %23 = vector.shape_cast %22 : vector<1x1x128x128xbf16> to vector<128x128xbf16>
    %cst_21 = arith.constant dense<0.000000e+00> : vector<8x128xf32>
    %24 = tpu.matmul %21, %23, %cst_21 {dimension_numbers = #tpu.dot_dimension_numbers<[1], [0], [0], [1], [0, 0, 1, 1], [], []>} : vector<8x128xbf16>, vector<128x128xbf16>, vector<8x128xf32> -> vector<8x128xf32>
    %c0_22 = arith.constant 0 : index
    %c1_23 = arith.constant 1 : index
    %c0_24 = arith.constant 0 : index
    %c0_25 = arith.constant 0 : index
    %25 = vector.load %arg5[%c0_22, %c1_23, %c0_24, %c0_25] : memref<3x3x1x128xf32, #tpu.memory_space<vmem>>, vector<1x1x1x128xf32>
    %26 = vector.shape_cast %25 : vector<1x1x1x128xf32> to vector<1x128xf32>
    %27 = vector.broadcast %26 : vector<1x128xf32> to vector<8x128xf32>
    %28 = arith.addf %24, %27 : vector<8x128xf32>
    %cst_26 = arith.constant 0.000000e+00 : f32
    %29 = vector.broadcast %cst_26 : f32 to vector<8x128xf32>
    %30 = arith.maximumf %28, %29 : vector<8x128xf32>
    %31 = arith.truncf %30 : vector<8x128xf32> to vector<8x128xbf16>
    %c0_27 = arith.constant 0 : index
    %c2 = arith.constant 2 : index
    %c0_28 = arith.constant 0 : index
    %c0_29 = arith.constant 0 : index
    %32 = vector.load %arg4[%c0_27, %c2, %c0_28, %c0_29] : memref<3x3x128x128xbf16, #tpu.memory_space<vmem>>, vector<1x1x128x128xbf16>
    %33 = vector.shape_cast %32 : vector<1x1x128x128xbf16> to vector<128x128xbf16>
    %cst_30 = arith.constant dense<0.000000e+00> : vector<8x128xf32>
    %34 = tpu.matmul %31, %33, %cst_30 {dimension_numbers = #tpu.dot_dimension_numbers<[1], [0], [0], [1], [0, 0, 1, 1], [], []>} : vector<8x128xbf16>, vector<128x128xbf16>, vector<8x128xf32> -> vector<8x128xf32>
    %c0_31 = arith.constant 0 : index
    %c2_32 = arith.constant 2 : index
    %c0_33 = arith.constant 0 : index
    %c0_34 = arith.constant 0 : index
    %35 = vector.load %arg5[%c0_31, %c2_32, %c0_33, %c0_34] : memref<3x3x1x128xf32, #tpu.memory_space<vmem>>, vector<1x1x1x128xf32>
    %36 = vector.shape_cast %35 : vector<1x1x1x128xf32> to vector<1x128xf32>
    %37 = vector.broadcast %36 : vector<1x128xf32> to vector<8x128xf32>
    %38 = arith.addf %34, %37 : vector<8x128xf32>
    %cst_35 = arith.constant 0.000000e+00 : f32
    %39 = vector.broadcast %cst_35 : f32 to vector<8x128xf32>
    %40 = arith.maximumf %38, %39 : vector<8x128xf32>
    %41 = arith.truncf %40 : vector<8x128xf32> to vector<8x128xbf16>
    %c0_36 = arith.constant 0 : index
    %c0_37 = arith.constant 0 : index
    %c0_38 = arith.constant 0 : index
    %42 = vector.load %arg6[%c0_36, %c0_37, %c0_38] : memref<3x128x128xbf16, #tpu.memory_space<vmem>>, vector<1x128x128xbf16>
    %43 = vector.shape_cast %42 : vector<1x128x128xbf16> to vector<128x128xbf16>
    %cst_39 = arith.constant dense<0.000000e+00> : vector<8x128xf32>
    %44 = tpu.matmul %41, %43, %cst_39 {dimension_numbers = #tpu.dot_dimension_numbers<[1], [0], [0], [1], [0, 0, 1, 1], [], []>} : vector<8x128xbf16>, vector<128x128xbf16>, vector<8x128xf32> -> vector<8x128xf32>
    %c0_40 = arith.constant 0 : index
    %c0_41 = arith.constant 0 : index
    %45 = vector.load %arg13[%c0_40, %c0_41] : memref<8x128xf32, #tpu.memory_space<vmem>>, vector<8x128xf32>
    tpu.vector_store %arg13[%c0_40, %c0_41], %44 {strides = array<i32>} : memref<8x128xf32, #tpu.memory_space<vmem>>, vector<8x128xf32>,
    %c1_42 = arith.constant 1 : index
    %c0_43 = arith.constant 0 : index
    %c0_44 = arith.constant 0 : index
    %46 = vector.load %arg2[%c1_42, %c0_43, %c0_44] : memref<3x48x128xbf16, #tpu.memory_space<vmem>>, vector<1x48x128xbf16>
    %47 = vector.shape_cast %46 : vector<1x48x128xbf16> to vector<48x128xbf16>
    %cst_45 = arith.constant dense<0.000000e+00> : vector<8x128xf32>
    %48 = tpu.matmul %1, %47, %cst_45 {dimension_numbers = #tpu.dot_dimension_numbers<[1], [0], [0], [1], [0, 0, 1, 1], [], []>} : vector<8x48xbf16>, vector<48x128xbf16>, vector<8x128xf32> -> vector<8x128xf32>
    %c1_46 = arith.constant 1 : index
    %c0_47 = arith.constant 0 : index
    %c0_48 = arith.constant 0 : index
    %49 = vector.load %arg3[%c1_46, %c0_47, %c0_48] : memref<3x1x128xf32, #tpu.memory_space<vmem>>, vector<1x1x128xf32>
    %50 = vector.shape_cast %49 : vector<1x1x128xf32> to vector<1x128xf32>
    %51 = vector.broadcast %50 : vector<1x128xf32> to vector<8x128xf32>
    %52 = arith.addf %48, %51 : vector<8x128xf32>
    %cst_49 = arith.constant 0.000000e+00 : f32
    %53 = vector.broadcast %cst_49 : f32 to vector<8x128xf32>
    %54 = arith.maximumf %52, %53 : vector<8x128xf32>
    %55 = arith.truncf %54 : vector<8x128xf32> to vector<8x128xbf16>
    %c1_50 = arith.constant 1 : index
    %c0_51 = arith.constant 0 : index
    %c0_52 = arith.constant 0 : index
    %c0_53 = arith.constant 0 : index
    %56 = vector.load %arg4[%c1_50, %c0_51, %c0_52, %c0_53] : memref<3x3x128x128xbf16, #tpu.memory_space<vmem>>, vector<1x1x128x128xbf16>
    %57 = vector.shape_cast %56 : vector<1x1x128x128xbf16> to vector<128x128xbf16>
    %cst_54 = arith.constant dense<0.000000e+00> : vector<8x128xf32>
    %58 = tpu.matmul %55, %57, %cst_54 {dimension_numbers = #tpu.dot_dimension_numbers<[1], [0], [0], [1], [0, 0, 1, 1], [], []>} : vector<8x128xbf16>, vector<128x128xbf16>, vector<8x128xf32> -> vector<8x128xf32>
    %c1_55 = arith.constant 1 : index
    %c0_56 = arith.constant 0 : index
    %c0_57 = arith.constant 0 : index
    %c0_58 = arith.constant 0 : index
    %59 = vector.load %arg5[%c1_55, %c0_56, %c0_57, %c0_58] : memref<3x3x1x128xf32, #tpu.memory_space<vmem>>, vector<1x1x1x128xf32>
    %60 = vector.shape_cast %59 : vector<1x1x1x128xf32> to vector<1x128xf32>
    %61 = vector.broadcast %60 : vector<1x128xf32> to vector<8x128xf32>
    %62 = arith.addf %58, %61 : vector<8x128xf32>
    %cst_59 = arith.constant 0.000000e+00 : f32
    %63 = vector.broadcast %cst_59 : f32 to vector<8x128xf32>
    %64 = arith.maximumf %62, %63 : vector<8x128xf32>
    %65 = arith.truncf %64 : vector<8x128xf32> to vector<8x128xbf16>
    %c1_60 = arith.constant 1 : index
    %c1_61 = arith.constant 1 : index
    %c0_62 = arith.constant 0 : index
    %c0_63 = arith.constant 0 : index
    %66 = vector.load %arg4[%c1_60, %c1_61, %c0_62, %c0_63] : memref<3x3x128x128xbf16, #tpu.memory_space<vmem>>, vector<1x1x128x128xbf16>
    %67 = vector.shape_cast %66 : vector<1x1x128x128xbf16> to vector<128x128xbf16>
    %cst_64 = arith.constant dense<0.000000e+00> : vector<8x128xf32>
    %68 = tpu.matmul %65, %67, %cst_64 {dimension_numbers = #tpu.dot_dimension_numbers<[1], [0], [0], [1], [0, 0, 1, 1], [], []>} : vector<8x128xbf16>, vector<128x128xbf16>, vector<8x128xf32> -> vector<8x128xf32>
    %c1_65 = arith.constant 1 : index
    %c1_66 = arith.constant 1 : index
    %c0_67 = arith.constant 0 : index
    %c0_68 = arith.constant 0 : index
    %69 = vector.load %arg5[%c1_65, %c1_66, %c0_67, %c0_68] : memref<3x3x1x128xf32, #tpu.memory_space<vmem>>, vector<1x1x1x128xf32>
    %70 = vector.shape_cast %69 : vector<1x1x1x128xf32> to vector<1x128xf32>
    %71 = vector.broadcast %70 : vector<1x128xf32> to vector<8x128xf32>
    %72 = arith.addf %68, %71 : vector<8x128xf32>
    %cst_69 = arith.constant 0.000000e+00 : f32
    %73 = vector.broadcast %cst_69 : f32 to vector<8x128xf32>
    %74 = arith.maximumf %72, %73 : vector<8x128xf32>
    %75 = arith.truncf %74 : vector<8x128xf32> to vector<8x128xbf16>
    %c1_70 = arith.constant 1 : index
    %c2_71 = arith.constant 2 : index
    %c0_72 = arith.constant 0 : index
    %c0_73 = arith.constant 0 : index
    %76 = vector.load %arg4[%c1_70, %c2_71, %c0_72, %c0_73] : memref<3x3x128x128xbf16, #tpu.memory_space<vmem>>, vector<1x1x128x128xbf16>
    %77 = vector.shape_cast %76 : vector<1x1x128x128xbf16> to vector<128x128xbf16>
    %cst_74 = arith.constant dense<0.000000e+00> : vector<8x128xf32>
    %78 = tpu.matmul %75, %77, %cst_74 {dimension_numbers = #tpu.dot_dimension_numbers<[1], [0], [0], [1], [0, 0, 1, 1], [], []>} : vector<8x128xbf16>, vector<128x128xbf16>, vector<8x128xf32> -> vector<8x128xf32>
    %c1_75 = arith.constant 1 : index
    %c2_76 = arith.constant 2 : index
    %c0_77 = arith.constant 0 : index
    %c0_78 = arith.constant 0 : index
    %79 = vector.load %arg5[%c1_75, %c2_76, %c0_77, %c0_78] : memref<3x3x1x128xf32, #tpu.memory_space<vmem>>, vector<1x1x1x128xf32>
    %80 = vector.shape_cast %79 : vector<1x1x1x128xf32> to vector<1x128xf32>
    %81 = vector.broadcast %80 : vector<1x128xf32> to vector<8x128xf32>
    %82 = arith.addf %78, %81 : vector<8x128xf32>
    %cst_79 = arith.constant 0.000000e+00 : f32
    %83 = vector.broadcast %cst_79 : f32 to vector<8x128xf32>
    %84 = arith.maximumf %82, %83 : vector<8x128xf32>
    %85 = arith.truncf %84 : vector<8x128xf32> to vector<8x128xbf16>
    %c1_80 = arith.constant 1 : index
    %c0_81 = arith.constant 0 : index
    %c0_82 = arith.constant 0 : index
    %86 = vector.load %arg6[%c1_80, %c0_81, %c0_82] : memref<3x128x128xbf16, #tpu.memory_space<vmem>>, vector<1x128x128xbf16>
    %87 = vector.shape_cast %86 : vector<1x128x128xbf16> to vector<128x128xbf16>
    %cst_83 = arith.constant dense<0.000000e+00> : vector<8x128xf32>
    %88 = tpu.matmul %85, %87, %cst_83 {dimension_numbers = #tpu.dot_dimension_numbers<[1], [0], [0], [1], [0, 0, 1, 1], [], []>} : vector<8x128xbf16>, vector<128x128xbf16>, vector<8x128xf32> -> vector<8x128xf32>
    %c0_84 = arith.constant 0 : index
    %c0_85 = arith.constant 0 : index
    %89 = vector.load %arg13[%c0_84, %c0_85] : memref<8x128xf32, #tpu.memory_space<vmem>>, vector<8x128xf32>
    %90 = arith.addf %89, %88 : vector<8x128xf32>
    %c0_86 = arith.constant 0 : index
    %c0_87 = arith.constant 0 : index
    %91 = vector.load %arg13[%c0_86, %c0_87] : memref<8x128xf32, #tpu.memory_space<vmem>>, vector<8x128xf32>
    tpu.vector_store %arg13[%c0_86, %c0_87], %90 {strides = array<i32>} : memref<8x128xf32, #tpu.memory_space<vmem>>, vector<8x128xf32>,
    %c2_88 = arith.constant 2 : index
    %c0_89 = arith.constant 0 : index
    %c0_90 = arith.constant 0 : index
    %92 = vector.load %arg2[%c2_88, %c0_89, %c0_90] : memref<3x48x128xbf16, #tpu.memory_space<vmem>>, vector<1x48x128xbf16>
    %93 = vector.shape_cast %92 : vector<1x48x128xbf16> to vector<48x128xbf16>
    %cst_91 = arith.constant dense<0.000000e+00> : vector<8x128xf32>
    %94 = tpu.matmul %1, %93, %cst_91 {dimension_numbers = #tpu.dot_dimension_numbers<[1], [0], [0], [1], [0, 0, 1, 1], [], []>} : vector<8x48xbf16>, vector<48x128xbf16>, vector<8x128xf32> -> vector<8x128xf32>
    %c2_92 = arith.constant 2 : index
    %c0_93 = arith.constant 0 : index
    %c0_94 = arith.constant 0 : index
    %95 = vector.load %arg3[%c2_92, %c0_93, %c0_94] : memref<3x1x128xf32, #tpu.memory_space<vmem>>, vector<1x1x128xf32>
    %96 = vector.shape_cast %95 : vector<1x1x128xf32> to vector<1x128xf32>
    %97 = vector.broadcast %96 : vector<1x128xf32> to vector<8x128xf32>
    %98 = arith.addf %94, %97 : vector<8x128xf32>
    %cst_95 = arith.constant 0.000000e+00 : f32
    %99 = vector.broadcast %cst_95 : f32 to vector<8x128xf32>
    %100 = arith.maximumf %98, %99 : vector<8x128xf32>
    %101 = arith.truncf %100 : vector<8x128xf32> to vector<8x128xbf16>
    %c2_96 = arith.constant 2 : index
    %c0_97 = arith.constant 0 : index
    %c0_98 = arith.constant 0 : index
    %c0_99 = arith.constant 0 : index
    %102 = vector.load %arg4[%c2_96, %c0_97, %c0_98, %c0_99] : memref<3x3x128x128xbf16, #tpu.memory_space<vmem>>, vector<1x1x128x128xbf16>
    %103 = vector.shape_cast %102 : vector<1x1x128x128xbf16> to vector<128x128xbf16>
    %cst_100 = arith.constant dense<0.000000e+00> : vector<8x128xf32>
    %104 = tpu.matmul %101, %103, %cst_100 {dimension_numbers = #tpu.dot_dimension_numbers<[1], [0], [0], [1], [0, 0, 1, 1], [], []>} : vector<8x128xbf16>, vector<128x128xbf16>, vector<8x128xf32> -> vector<8x128xf32>
    %c2_101 = arith.constant 2 : index
    %c0_102 = arith.constant 0 : index
    %c0_103 = arith.constant 0 : index
    %c0_104 = arith.constant 0 : index
    %105 = vector.load %arg5[%c2_101, %c0_102, %c0_103, %c0_104] : memref<3x3x1x128xf32, #tpu.memory_space<vmem>>, vector<1x1x1x128xf32>
    %106 = vector.shape_cast %105 : vector<1x1x1x128xf32> to vector<1x128xf32>
    %107 = vector.broadcast %106 : vector<1x128xf32> to vector<8x128xf32>
    %108 = arith.addf %104, %107 : vector<8x128xf32>
    %cst_105 = arith.constant 0.000000e+00 : f32
    %109 = vector.broadcast %cst_105 : f32 to vector<8x128xf32>
    %110 = arith.maximumf %108, %109 : vector<8x128xf32>
    %111 = arith.truncf %110 : vector<8x128xf32> to vector<8x128xbf16>
    %c2_106 = arith.constant 2 : index
    %c1_107 = arith.constant 1 : index
    %c0_108 = arith.constant 0 : index
    %c0_109 = arith.constant 0 : index
    %112 = vector.load %arg4[%c2_106, %c1_107, %c0_108, %c0_109] : memref<3x3x128x128xbf16, #tpu.memory_space<vmem>>, vector<1x1x128x128xbf16>
    %113 = vector.shape_cast %112 : vector<1x1x128x128xbf16> to vector<128x128xbf16>
    %cst_110 = arith.constant dense<0.000000e+00> : vector<8x128xf32>
    %114 = tpu.matmul %111, %113, %cst_110 {dimension_numbers = #tpu.dot_dimension_numbers<[1], [0], [0], [1], [0, 0, 1, 1], [], []>} : vector<8x128xbf16>, vector<128x128xbf16>, vector<8x128xf32> -> vector<8x128xf32>
    %c2_111 = arith.constant 2 : index
    %c1_112 = arith.constant 1 : index
    %c0_113 = arith.constant 0 : index
    %c0_114 = arith.constant 0 : index
    %115 = vector.load %arg5[%c2_111, %c1_112, %c0_113, %c0_114] : memref<3x3x1x128xf32, #tpu.memory_space<vmem>>, vector<1x1x1x128xf32>
    %116 = vector.shape_cast %115 : vector<1x1x1x128xf32> to vector<1x128xf32>
    %117 = vector.broadcast %116 : vector<1x128xf32> to vector<8x128xf32>
    %118 = arith.addf %114, %117 : vector<8x128xf32>
    %cst_115 = arith.constant 0.000000e+00 : f32
    %119 = vector.broadcast %cst_115 : f32 to vector<8x128xf32>
    %120 = arith.maximumf %118, %119 : vector<8x128xf32>
    %121 = arith.truncf %120 : vector<8x128xf32> to vector<8x128xbf16>
    %c2_116 = arith.constant 2 : index
    %c2_117 = arith.constant 2 : index
    %c0_118 = arith.constant 0 : index
    %c0_119 = arith.constant 0 : index
    %122 = vector.load %arg4[%c2_116, %c2_117, %c0_118, %c0_119] : memref<3x3x128x128xbf16, #tpu.memory_space<vmem>>, vector<1x1x128x128xbf16>
    %123 = vector.shape_cast %122 : vector<1x1x128x128xbf16> to vector<128x128xbf16>
    %cst_120 = arith.constant dense<0.000000e+00> : vector<8x128xf32>
    %124 = tpu.matmul %121, %123, %cst_120 {dimension_numbers = #tpu.dot_dimension_numbers<[1], [0], [0], [1], [0, 0, 1, 1], [], []>} : vector<8x128xbf16>, vector<128x128xbf16>, vector<8x128xf32> -> vector<8x128xf32>
    %c2_121 = arith.constant 2 : index
    %c2_122 = arith.constant 2 : index
    %c0_123 = arith.constant 0 : index
    %c0_124 = arith.constant 0 : index
    %125 = vector.load %arg5[%c2_121, %c2_122, %c0_123, %c0_124] : memref<3x3x1x128xf32, #tpu.memory_space<vmem>>, vector<1x1x1x128xf32>
    %126 = vector.shape_cast %125 : vector<1x1x1x128xf32> to vector<1x128xf32>
    %127 = vector.broadcast %126 : vector<1x128xf32> to vector<8x128xf32>
    %128 = arith.addf %124, %127 : vector<8x128xf32>
    %cst_125 = arith.constant 0.000000e+00 : f32
    %129 = vector.broadcast %cst_125 : f32 to vector<8x128xf32>
    %130 = arith.maximumf %128, %129 : vector<8x128xf32>
    %131 = arith.truncf %130 : vector<8x128xf32> to vector<8x128xbf16>
    %c2_126 = arith.constant 2 : index
    %c0_127 = arith.constant 0 : index
    %c0_128 = arith.constant 0 : index
    %132 = vector.load %arg6[%c2_126, %c0_127, %c0_128] : memref<3x128x128xbf16, #tpu.memory_space<vmem>>, vector<1x128x128xbf16>
    %133 = vector.shape_cast %132 : vector<1x128x128xbf16> to vector<128x128xbf16>
    %cst_129 = arith.constant dense<0.000000e+00> : vector<8x128xf32>
    %134 = tpu.matmul %131, %133, %cst_129 {dimension_numbers = #tpu.dot_dimension_numbers<[1], [0], [0], [1], [0, 0, 1, 1], [], []>} : vector<8x128xbf16>, vector<128x128xbf16>, vector<8x128xf32> -> vector<8x128xf32>
    %c0_130 = arith.constant 0 : index
    %c0_131 = arith.constant 0 : index
    %135 = vector.load %arg13[%c0_130, %c0_131] : memref<8x128xf32, #tpu.memory_space<vmem>>, vector<8x128xf32>
    %136 = arith.addf %135, %134 : vector<8x128xf32>
    %c0_132 = arith.constant 0 : index
    %c0_133 = arith.constant 0 : index
    %137 = vector.load %arg13[%c0_132, %c0_133] : memref<8x128xf32, #tpu.memory_space<vmem>>, vector<8x128xf32>
    tpu.vector_store %arg13[%c0_132, %c0_133], %136 {strides = array<i32>} : memref<8x128xf32, #tpu.memory_space<vmem>>, vector<8x128xf32>,
    %c0_134 = arith.constant 0 : index
    %c0_135 = arith.constant 0 : index
    %138 = vector.load %arg13[%c0_134, %c0_135] : memref<8x128xf32, #tpu.memory_space<vmem>>, vector<8x128xf32>
    %c0_136 = arith.constant 0 : index
    %c0_137 = arith.constant 0 : index
    %139 = vector.load %arg7[%c0_136, %c0_137] : memref<1x128xf32, #tpu.memory_space<vmem>>, vector<1x128xf32>
    %140 = vector.broadcast %139 : vector<1x128xf32> to vector<8x128xf32>
    %141 = arith.addf %138, %140 : vector<8x128xf32>
    %cst_138 = arith.constant 0.000000e+00 : f32
    %142 = vector.broadcast %cst_138 : f32 to vector<8x128xf32>
    %143 = arith.maximumf %141, %142 : vector<8x128xf32>
    %144 = arith.truncf %143 : vector<8x128xf32> to vector<8x128xbf16>
    %c0_139 = arith.constant 0 : index
    %c0_140 = arith.constant 0 : index
    %c0_141 = arith.constant 0 : index
    %145 = vector.load %arg8[%c0_139, %c0_140, %c0_141] : memref<3x128x128xbf16, #tpu.memory_space<vmem>>, vector<1x128x128xbf16>
    %146 = vector.shape_cast %145 : vector<1x128x128xbf16> to vector<128x128xbf16>
    %cst_142 = arith.constant dense<0.000000e+00> : vector<8x128xf32>
    %147 = tpu.matmul %144, %146, %cst_142 {dimension_numbers = #tpu.dot_dimension_numbers<[1], [0], [0], [1], [0, 0, 1, 1], [], []>} : vector<8x128xbf16>, vector<128x128xbf16>, vector<8x128xf32> -> vector<8x128xf32>
    %c0_143 = arith.constant 0 : index
    %c0_144 = arith.constant 0 : index
    %c0_145 = arith.constant 0 : index
    %148 = vector.load %arg9[%c0_143, %c0_144, %c0_145] : memref<3x1x128xf32, #tpu.memory_space<vmem>>, vector<1x1x128xf32>
    %149 = vector.shape_cast %148 : vector<1x1x128xf32> to vector<1x128xf32>
    %150 = vector.broadcast %149 : vector<1x128xf32> to vector<8x128xf32>
    %151 = arith.addf %147, %150 : vector<8x128xf32>
    %cst_146 = arith.constant 0.000000e+00 : f32
    %152 = vector.broadcast %cst_146 : f32 to vector<8x128xf32>
    %153 = arith.maximumf %151, %152 : vector<8x128xf32>
    %154 = arith.truncf %153 : vector<8x128xf32> to vector<8x128xbf16>
    %c1_147 = arith.constant 1 : index
    %c0_148 = arith.constant 0 : index
    %c0_149 = arith.constant 0 : index
    %155 = vector.load %arg8[%c1_147, %c0_148, %c0_149] : memref<3x128x128xbf16, #tpu.memory_space<vmem>>, vector<1x128x128xbf16>
    %156 = vector.shape_cast %155 : vector<1x128x128xbf16> to vector<128x128xbf16>
    %cst_150 = arith.constant dense<0.000000e+00> : vector<8x128xf32>
    %157 = tpu.matmul %154, %156, %cst_150 {dimension_numbers = #tpu.dot_dimension_numbers<[1], [0], [0], [1], [0, 0, 1, 1], [], []>} : vector<8x128xbf16>, vector<128x128xbf16>, vector<8x128xf32> -> vector<8x128xf32>
    %c1_151 = arith.constant 1 : index
    %c0_152 = arith.constant 0 : index
    %c0_153 = arith.constant 0 : index
    %158 = vector.load %arg9[%c1_151, %c0_152, %c0_153] : memref<3x1x128xf32, #tpu.memory_space<vmem>>, vector<1x1x128xf32>
    %159 = vector.shape_cast %158 : vector<1x1x128xf32> to vector<1x128xf32>
    %160 = vector.broadcast %159 : vector<1x128xf32> to vector<8x128xf32>
    %161 = arith.addf %157, %160 : vector<8x128xf32>
    %cst_154 = arith.constant 0.000000e+00 : f32
    %162 = vector.broadcast %cst_154 : f32 to vector<8x128xf32>
    %163 = arith.maximumf %161, %162 : vector<8x128xf32>
    %164 = arith.truncf %163 : vector<8x128xf32> to vector<8x128xbf16>
    %c2_155 = arith.constant 2 : index
    %c0_156 = arith.constant 0 : index
    %c0_157 = arith.constant 0 : index
    %165 = vector.load %arg8[%c2_155, %c0_156, %c0_157] : memref<3x128x128xbf16, #tpu.memory_space<vmem>>, vector<1x128x128xbf16>
    %166 = vector.shape_cast %165 : vector<1x128x128xbf16> to vector<128x128xbf16>
    %cst_158 = arith.constant dense<0.000000e+00> : vector<8x128xf32>
    %167 = tpu.matmul %164, %166, %cst_158 {dimension_numbers = #tpu.dot_dimension_numbers<[1], [0], [0], [1], [0, 0, 1, 1], [], []>} : vector<8x128xbf16>, vector<128x128xbf16>, vector<8x128xf32> -> vector<8x128xf32>
    %c2_159 = arith.constant 2 : index
    %c0_160 = arith.constant 0 : index
    %c0_161 = arith.constant 0 : index
    %168 = vector.load %arg9[%c2_159, %c0_160, %c0_161] : memref<3x1x128xf32, #tpu.memory_space<vmem>>, vector<1x1x128xf32>
    %169 = vector.shape_cast %168 : vector<1x1x128xf32> to vector<1x128xf32>
    %170 = vector.broadcast %169 : vector<1x128xf32> to vector<8x128xf32>
    %171 = arith.addf %167, %170 : vector<8x128xf32>
    %cst_162 = arith.constant 0.000000e+00 : f32
    %172 = vector.broadcast %cst_162 : f32 to vector<8x128xf32>
    %173 = arith.maximumf %171, %172 : vector<8x128xf32>
    %174 = arith.truncf %173 : vector<8x128xf32> to vector<8x128xbf16>
    %c0_163 = arith.constant 0 : index
    %c0_164 = arith.constant 0 : index
    %175 = vector.load %arg10[%c0_163, %c0_164] : memref<128x128xbf16, #tpu.memory_space<vmem>>, vector<128x128xbf16>
    %cst_165 = arith.constant dense<0.000000e+00> : vector<8x128xf32>
    %176 = tpu.matmul %174, %175, %cst_165 {dimension_numbers = #tpu.dot_dimension_numbers<[1], [0], [0], [1], [0, 0, 1, 1], [], []>} : vector<8x128xbf16>, vector<128x128xbf16>, vector<8x128xf32> -> vector<8x128xf32>
    %c0_166 = arith.constant 0 : index
    %c0_167 = arith.constant 0 : index
    %177 = vector.load %arg11[%c0_166, %c0_167] : memref<1x128xf32, #tpu.memory_space<vmem>>, vector<1x128xf32>
    %178 = vector.broadcast %177 : vector<1x128xf32> to vector<8x128xf32>
    %179 = arith.addf %176, %178 : vector<8x128xf32>
    %cst_168 = arith.constant 0.000000e+00 : f32
    %180 = vector.broadcast %cst_168 : f32 to vector<8x128xf32>
    %181 = arith.maximumf %179, %180 : vector<8x128xf32>
    %c0_169 = arith.constant 0 : index
    %c0_170 = arith.constant 0 : index
    %182 = vector.load %arg12[%c0_169, %c0_170] : memref<8x128xf32, #tpu.memory_space<vmem>>, vector<8x128xf32>
    tpu.vector_store %arg12[%c0_169, %c0_170], %181 {strides = array<i32>} : memref<8x128xf32, #tpu.memory_space<vmem>>, vector<8x128xf32>,
    return
  }
  func.func @transform_0(%arg0: i32) -> (i32, i32) {
    %c0_i32 = arith.constant 0 : i32
    %c0_i32_0 = arith.constant 0 : i32
    return %arg0, %c0_i32 : i32, i32
  }
  func.func @transform_1(%arg0: i32) -> (i32, i32, i32) {
    %c0_i32 = arith.constant 0 : i32
    %c0_i32_0 = arith.constant 0 : i32
    %c0_i32_1 = arith.constant 0 : i32
    %c0_i32_2 = arith.constant 0 : i32
    return %c0_i32, %c0_i32_0, %c0_i32_1 : i32, i32, i32
  }
  func.func @transform_2(%arg0: i32) -> (i32, i32, i32) {
    %c0_i32 = arith.constant 0 : i32
    %c0_i32_0 = arith.constant 0 : i32
    %c0_i32_1 = arith.constant 0 : i32
    %c0_i32_2 = arith.constant 0 : i32
    return %c0_i32, %c0_i32_0, %c0_i32_1 : i32, i32, i32
  }
  func.func @transform_3(%arg0: i32) -> (i32, i32, i32, i32) {
    %c0_i32 = arith.constant 0 : i32
    %c0_i32_0 = arith.constant 0 : i32
    %c0_i32_1 = arith.constant 0 : i32
    %c0_i32_2 = arith.constant 0 : i32
    %c0_i32_3 = arith.constant 0 : i32
    return %c0_i32, %c0_i32_0, %c0_i32_1, %c0_i32_2 : i32, i32, i32, i32
  }
  func.func @transform_4(%arg0: i32) -> (i32, i32, i32, i32) {
    %c0_i32 = arith.constant 0 : i32
    %c0_i32_0 = arith.constant 0 : i32
    %c0_i32_1 = arith.constant 0 : i32
    %c0_i32_2 = arith.constant 0 : i32
    %c0_i32_3 = arith.constant 0 : i32
    return %c0_i32, %c0_i32_0, %c0_i32_1, %c0_i32_2 : i32, i32, i32, i32
  }
  func.func @transform_5(%arg0: i32) -> (i32, i32, i32) {
    %c0_i32 = arith.constant 0 : i32
    %c0_i32_0 = arith.constant 0 : i32
    %c0_i32_1 = arith.constant 0 : i32
    %c0_i32_2 = arith.constant 0 : i32
    return %c0_i32, %c0_i32_0, %c0_i32_1 : i32, i32, i32
  }
  func.func @transform_6(%arg0: i32) -> (i32, i32) {
    %c0_i32 = arith.constant 0 : i32
    %c0_i32_0 = arith.constant 0 : i32
    %c0_i32_1 = arith.constant 0 : i32
    return %c0_i32, %c0_i32_0 : i32, i32
  }
  func.func @transform_7(%arg0: i32) -> (i32, i32, i32) {
    %c0_i32 = arith.constant 0 : i32
    %c0_i32_0 = arith.constant 0 : i32
    %c0_i32_1 = arith.constant 0 : i32
    %c0_i32_2 = arith.constant 0 : i32
    return %c0_i32, %c0_i32_0, %c0_i32_1 : i32, i32, i32
  }
  func.func @transform_8(%arg0: i32) -> (i32, i32, i32) {
    %c0_i32 = arith.constant 0 : i32
    %c0_i32_0 = arith.constant 0 : i32
    %c0_i32_1 = arith.constant 0 : i32
    %c0_i32_2 = arith.constant 0 : i32
    return %c0_i32, %c0_i32_0, %c0_i32_1 : i32, i32, i32
  }
  func.func @transform_9(%arg0: i32) -> (i32, i32) {
    %c0_i32 = arith.constant 0 : i32
    %c0_i32_0 = arith.constant 0 : i32
    %c0_i32_1 = arith.constant 0 : i32
    return %c0_i32, %c0_i32_0 : i32, i32
  }
  func.func @transform_10(%arg0: i32) -> (i32, i32) {
    %c0_i32 = arith.constant 0 : i32
    %c0_i32_0 = arith.constant 0 : i32
    %c0_i32_1 = arith.constant 0 : i32
    return %c0_i32, %c0_i32_0 : i32, i32
  }
  func.func @transform_11(%arg0: i32) -> (i32, i32) {
    %c0_i32 = arith.constant 0 : i32
    %c0_i32_0 = arith.constant 0 : i32
    return %arg0, %c0_i32 : i32, i32
  }
}

</mosaic_0001>

<llo_original>
// kernel: nchannel_dense_embedding.1
$region0: #{nchannel_dense_embedding.1}
  #allocation0 [shape = 'u32[]', space=smem, size = 0x4, offset = 0x4, fixed_abs, tag = 'smem constant byte address 0x4 - core index']
  #allocation1 [shape = 'u32[144,128]{1,0:T(1,128)}', space=vmem, size = 0x12000, scoped, tag = 'internal scratch']
  #allocation2 [shape = 'f32[8,128]{1,0:T(8,128)}', space=vmem, size = 0x1000, scoped, tag = 'scratch operand']
  %s0 = inlined_call_operand.vmem [shape: f32[8,48], index: 0, kind: input, shape index: {}]
  %s1 = inlined_call_operand.hbm [shape: bf16[3,48,128], index: 1, kind: input, shape index: {}]
  %s2 = inlined_call_operand.vmem [shape: f32[3,1,128], index: 2, kind: input, shape index: {}]
  %s3 = inlined_call_operand.hbm [shape: bf16[3,3,128,128], index: 3, kind: input, shape index: {}]
  %s4 = inlined_call_operand.vmem [shape: f32[3,3,1,128], index: 4, kind: input, shape index: {}]
  %s5 = inlined_call_operand.hbm [shape: bf16[3,128,128], index: 5, kind: input, shape index: {}]
  %s6 = inlined_call_operand.vmem [shape: f32[1,128], index: 6, kind: input, shape index: {}]
  %s7 = inlined_call_operand.hbm [shape: bf16[3,128,128], index: 7, kind: input, shape index: {}]
  %s8 = inlined_call_operand.vmem [shape: f32[3,1,128], index: 8, kind: input, shape index: {}]
  %s9 = inlined_call_operand.hbm [shape: bf16[128,128], index: 9, kind: input, shape index: {}]
  %s10 = inlined_call_operand.vmem [shape: f32[1,128], index: 10, kind: input, shape index: {}]
  %s11 = inlined_call_operand.vmem [shape: f32[8,128], index: 11, kind: output, shape index: {}]
  %s12 = sld [smem:[#allocation0]]
  $region74: #{nchannel_dense_embedding.1} parent=0
    _
  %s14 = ssub.s32 1, %s12
  %s15 = scalar_select 0, %s14, %s12
  $region1: #{nchannel_dense_embedding.1} parent=0
    #allocation3 [shape = 'u8[36864]{0}', space=vmem, size = 0x9000, scoped, tag = 'input window, operand 1, single buffered']
    #allocation4 [shape = 's32[1]{0}', space=sflag, size = 0x4, scoped, tag = 'scoped memory for nchannel_dense_embedding.1']
    #allocation5 [shape = 'u8[294912]{0}', space=vmem, size = 0x48000, scoped, tag = 'input window, operand 3, single buffered']
    #allocation6 [shape = 's32[1]{0}', space=sflag, size = 0x4, scoped, tag = 'scoped memory for nchannel_dense_embedding.1']
    #allocation7 [shape = 'u8[98304]{0}', space=vmem, size = 0x18000, scoped, tag = 'input window, operand 5, single buffered']
    #allocation8 [shape = 'u8[98304]{0}', space=vmem, size = 0x18000, scoped, tag = 'input window, operand 7, single buffered']
    #allocation9 [shape = 's32[1]{0}', space=sflag, size = 0x4, scoped, tag = 'scoped memory for nchannel_dense_embedding.1']
    #allocation10 [shape = 'u8[32768]{0}', space=vmem, size = 0x8000, scoped, tag = 'input window, operand 9, single buffered']
    %16 = vsyncpa [#allocation4], 0
    %17 = vsyncpa [#allocation6], 0
    %18 = vsyncpa [#allocation9], 0
    // Predicated region
    $region2: #{nchannel_dense_embedding.1} parent=1 // pred_check
      _
    $region3: #{nchannel_dense_embedding.1} parent=1 // pred_check_branch
      %20 = sbr.rel (0) target = $region5
    $region4: #{nchannel_dense_embedding.1} parent=1 // pred_region
      _
    $region5: #{nchannel_dense_embedding.1} parent=1 // pred_fallthru
      _
    // Predicated region
    $region6: #{nchannel_dense_embedding.1} parent=1 // pred_check
      _
    $region7: #{nchannel_dense_embedding.1} parent=1 // pred_check_branch
      %22 = sbr.rel (0) target = $region9
    $region8: #{nchannel_dense_embedding.1} parent=1 // pred_region
      %s24 = ssub.s32 1152, 1152
      %25 = vsyncadd [#allocation4], %s24
      %s26 = sshll.u32 [#allocation3], 4
      %s27 = int_to_ptr.vmem [resolvable:$true] %s26
      %32 = dma.hbm_to_vmem [thread:$0]  %s1, 1152, %s27, [#allocation4], 64, 64, 4
    $region9: #{nchannel_dense_embedding.1} parent=1 // pred_fallthru
      _
    // Predicated region
    $region10: #{nchannel_dense_embedding.1} parent=1 // pred_check
      _
    $region11: #{nchannel_dense_embedding.1} parent=1 // pred_check_branch
      %34 = sbr.rel (0) target = $region13
    $region12: #{nchannel_dense_embedding.1} parent=1 // pred_region
      _
    $region13: #{nchannel_dense_embedding.1} parent=1 // pred_fallthru
      _
    // Predicated region
    $region14: #{nchannel_dense_embedding.1} parent=1 // pred_check
      _
    $region15: #{nchannel_dense_embedding.1} parent=1 // pred_check_branch
      %36 = sbr.rel (0) target = $region17
    $region16: #{nchannel_dense_embedding.1} parent=1 // pred_region
      %s38 = ssub.s32 9216, 9216
      %39 = vsyncadd [#allocation6], %s38
      %s40 = sshll.u32 [#allocation5], 4
      %s41 = int_to_ptr.vmem [resolvable:$true] %s40
      %46 = dma.hbm_to_vmem [thread:$0]  %s3, 9216, %s41, [#allocation6], 64, 64, 4
    $region17: #{nchannel_dense_embedding.1} parent=1 // pred_fallthru
      _
    // Predicated region
    $region18: #{nchannel_dense_embedding.1} parent=1 // pred_check
      _
    $region19: #{nchannel_dense_embedding.1} parent=1 // pred_check_branch
      %48 = sbr.rel (0) target = $region21
    $region20: #{nchannel_dense_embedding.1} parent=1 // pred_region
      _
    $region21: #{nchannel_dense_embedding.1} parent=1 // pred_fallthru
      _
    // Predicated region
    $region22: #{nchannel_dense_embedding.1} parent=1 // pred_check
      _
    $region23: #{nchannel_dense_embedding.1} parent=1 // pred_check_branch
      %50 = sbr.rel (0) target = $region25
    $region24: #{nchannel_dense_embedding.1} parent=1 // pred_region
      %s52 = ssub.s32 3072, 3072
      %53 = vsyncadd [#allocation6], %s52
      %s54 = sshll.u32 [#allocation7], 4
      %s55 = int_to_ptr.vmem [resolvable:$true] %s54
      %60 = dma.hbm_to_vmem [thread:$0]  %s5, 3072, %s55, [#allocation6], 64, 64, 4
    $region25: #{nchannel_dense_embedding.1} parent=1 // pred_fallthru
      _
    // Predicated region
    $region26: #{nchannel_dense_embedding.1} parent=1 // pred_check
      _
    $region27: #{nchannel_dense_embedding.1} parent=1 // pred_check_branch
      %62 = sbr.rel (0) target = $region29
    $region28: #{nchannel_dense_embedding.1} parent=1 // pred_region
      _
    $region29: #{nchannel_dense_embedding.1} parent=1 // pred_fallthru
      _
    // Predicated region
    $region30: #{nchannel_dense_embedding.1} parent=1 // pred_check
      _
    $region31: #{nchannel_dense_embedding.1} parent=1 // pred_check_branch
      %64 = sbr.rel (0) target = $region33
    $region32: #{nchannel_dense_embedding.1} parent=1 // pred_region
      %s66 = ssub.s32 3072, 3072
      %67 = vsyncadd [#allocation9], %s66
      %s68 = sshll.u32 [#allocation8], 4
      %s69 = int_to_ptr.vmem [resolvable:$true] %s68
      %74 = dma.hbm_to_vmem [thread:$0]  %s7, 3072, %s69, [#allocation9], 64, 64, 4
    $region33: #{nchannel_dense_embedding.1} parent=1 // pred_fallthru
      _
    // Predicated region
    $region34: #{nchannel_dense_embedding.1} parent=1 // pred_check
      _
    $region35: #{nchannel_dense_embedding.1} parent=1 // pred_check_branch
      %76 = sbr.rel (0) target = $region37
    $region36: #{nchannel_dense_embedding.1} parent=1 // pred_region
      _
    $region37: #{nchannel_dense_embedding.1} parent=1 // pred_fallthru
      _
    // Predicated region
    $region38: #{nchannel_dense_embedding.1} parent=1 // pred_check
      _
    $region39: #{nchannel_dense_embedding.1} parent=1 // pred_check_branch
      %78 = sbr.rel (0) target = $region41
    $region40: #{nchannel_dense_embedding.1} parent=1 // pred_region
      %s80 = ssub.s32 1024, 1024
      %81 = vsyncadd [#allocation9], %s80
      %s82 = sshll.u32 [#allocation10], 4
      %s83 = int_to_ptr.vmem [resolvable:$true] %s82
      %88 = dma.hbm_to_vmem [thread:$0]  %s9, 1024, %s83, [#allocation9], 64, 64, 4
    $region41: #{nchannel_dense_embedding.1} parent=1 // pred_fallthru
      _
    // Predicated region
    $region42: #{nchannel_dense_embedding.1} parent=1 // pred_check
      _
    $region43: #{nchannel_dense_embedding.1} parent=1 // pred_check_branch
      %90 = sbr.rel (0) target = $region45
    $region44: #{nchannel_dense_embedding.1} parent=1 // pred_region
      _
    $region45: #{nchannel_dense_embedding.1} parent=1 // pred_fallthru
      _
    // Predicated region
    $region46: #{nchannel_dense_embedding.1} parent=1 // pred_check
      _
    $region47: #{nchannel_dense_embedding.1} parent=1 // pred_check_branch
      %92 = sbr.rel (0) target = $region49
    $region48: #{nchannel_dense_embedding.1} parent=1 // pred_region
      %93 = dma.done [#allocation4], 1152
    $region49: #{nchannel_dense_embedding.1} parent=1 // pred_fallthru
      _
    // Predicated region
    $region50: #{nchannel_dense_embedding.1} parent=1 // pred_check
      _
    $region51: #{nchannel_dense_embedding.1} parent=1 // pred_check_branch
      %95 = sbr.rel (0) target = $region53
    $region52: #{nchannel_dense_embedding.1} parent=1 // pred_region
      %96 = dma.done [#allocation6], 9216
    $region53: #{nchannel_dense_embedding.1} parent=1 // pred_fallthru
      _
    // Predicated region
    $region54: #{nchannel_dense_embedding.1} parent=1 // pred_check
      _
    $region55: #{nchannel_dense_embedding.1} parent=1 // pred_check_branch
      %98 = sbr.rel (0) target = $region57
    $region56: #{nchannel_dense_embedding.1} parent=1 // pred_region
      %99 = dma.done [#allocation6], 3072
    $region57: #{nchannel_dense_embedding.1} parent=1 // pred_fallthru
      _
    // Predicated region
    $region58: #{nchannel_dense_embedding.1} parent=1 // pred_check
      _
    $region59: #{nchannel_dense_embedding.1} parent=1 // pred_check_branch
      %101 = sbr.rel (0) target = $region61
    $region60: #{nchannel_dense_embedding.1} parent=1 // pred_region
      %102 = dma.done [#allocation9], 3072
    $region61: #{nchannel_dense_embedding.1} parent=1 // pred_fallthru
      _
    // Predicated region
    $region62: #{nchannel_dense_embedding.1} parent=1 // pred_check
      _
    $region63: #{nchannel_dense_embedding.1} parent=1 // pred_check_branch
      %104 = sbr.rel (0) target = $region65
    $region64: #{nchannel_dense_embedding.1} parent=1 // pred_region
      %105 = dma.done [#allocation9], 1024
    $region65: #{nchannel_dense_embedding.1} parent=1 // pred_fallthru
      _
    %v107 = vld [vmem:[%s0] sm:$0xff]
    %v108 = vpack.c.bf16 %v107, %v107
    %v109 = vld [vmem:[#allocation3] sm:$0xf]
    %v110 = vld [vmem:[#allocation3 + $0x4] sm:$0xf]
    %v111 = vld [vmem:[#allocation3 + $0x8] sm:$0xf]
    %v112 = vld [vmem:[#allocation3 + $0xc] sm:$0xf]
    %v113 = vld [vmem:[#allocation3 + $0x10] sm:$0xf]
    %v114 = vld [vmem:[#allocation3 + $0x14] sm:$0xf]
    %v115 = vld [vmem:[%s2] sm:$0x1]
    %v117 = vlaneseq
    %v118 = vshrl.u32 %v117, 7
    %v119 = vsub.s32 0, %v118
    %v120 = vrot.slane %v115, %v119
    %v128 = vunpack.c.l.b16 %v109
    %v129 = vunpack.c.l.b16 %v110
    %v130 = vunpack.c.l.b16 %v111
    %v131 = vunpack.c.l.b16 %v112
    %v132 = vunpack.c.l.b16 %v113
    %v133 = vunpack.c.l.b16 %v114
    %v134 = vpack.c.b16 %v129, %v128
    %v135 = vpack.c.b16 %v131, %v130
    %v136 = vpack.c.b16 %v133, %v132
    %vm140 = vcmask 392192
    %v142 = vsel %vm140, %v108, 0
    %144 = vmatprep.subr.bf16.mxu0 0
    %145 = vmatpush1.bf16.msra.mxu0 %v134
    %146 = vmatprep.subr.bf16.mxu0 0
    %147 = vmatpush1.bf16.msra.mxu0 %v135
    %148 = vmatprep.subr.bf16.mxu0 0
    %149 = vmatpush1.bf16.msra.mxu0 %v136
    %150 = vmatprep.subr.bf16.mxu0 0
    %151 = vmatpush1.bf16.msra.mxu0 0
    %152 = vmatprep.subr.bf16.mxu0 0
    %153 = vmatpush1.bf16.msra.mxu0 0
    %154 = vmatprep.subr.bf16.mxu0 0
    %155 = vmatpush1.bf16.msra.mxu0 0
    %156 = vmatprep.subr.bf16.mxu0 0
    %157 = vmatpush1.bf16.msra.mxu0 0
    %158 = vmatprep.subr.bf16.mxu0 0
    %159 = vmatpush1.bf16.msra.mxu0 0
    %160 = vmatprep.subr.bf16.mxu0 0
    %161 = vmatpush1.bf16.msra.mxu0 0
    %162 = vmatprep.subr.bf16.mxu0 0
    %163 = vmatpush1.bf16.msra.mxu0 0
    %164 = vmatprep.subr.bf16.mxu0 0
    %165 = vmatpush1.bf16.msra.mxu0 0
    %166 = vmatprep.subr.bf16.mxu0 0
    %167 = vmatpush1.bf16.msra.mxu0 0
    %168 = vmatprep.subr.bf16.mxu0 0
    %169 = vmatpush1.bf16.msra.mxu0 0
    %170 = vmatprep.subr.bf16.mxu0 0
    %171 = vmatpush1.bf16.msra.mxu0 0
    %172 = vmatprep.subr.bf16.mxu0 0
    %173 = vmatpush1.bf16.msra.mxu0 0
    %174 = vmatprep.subr.bf16.mxu0 0
    %175 = vmatpush1.bf16.msra.mxu0 0
    %176 = vmatprep.mubr.bf16.mxu0 0
    %177 = vmatmul.mubr.bf16.gmra.mrb[0].mxu0 %v142
    %v178 = vpop.f32.mrb[0].mxu0
    %v179 = vadd.f32 %v120, %v178
    %v180 = vpop.f32.mrb[0].mxu0
    %v181 = vpop.f32.mrb[0].mxu0
    %v182 = vpop.f32.mrb[0].mxu0
    %183 = vdwg.mxu0
    %v184 = vmax.f32 %v179, 0.0
    %v185 = vpack.c.bf16 %v184, %v184
    %v186 = vld [vmem:[#allocation5] sm:$0xf]
    %v187 = vld [vmem:[#allocation5 + $0x4] sm:$0xf]
    %v188 = vld [vmem:[#allocation5 + $0x8] sm:$0xf]
    %v189 = vld [vmem:[#allocation5 + $0xc] sm:$0xf]
    %v190 = vld [vmem:[#allocation5 + $0x10] sm:$0xf]
    %v191 = vld [vmem:[#allocation5 + $0x14] sm:$0xf]
    %v192 = vld [vmem:[#allocation5 + $0x18] sm:$0xf]
    %v193 = vld [vmem:[#allocation5 + $0x1c] sm:$0xf]
    %v194 = vld [vmem:[#allocation5 + $0x20] sm:$0xf]
    %v195 = vld [vmem:[#allocation5 + $0x24] sm:$0xf]
    %v196 = vld [vmem:[#allocation5 + $0x28] sm:$0xf]
    %v197 = vld [vmem:[#allocation5 + $0x2c] sm:$0xf]
    %v198 = vld [vmem:[#allocation5 + $0x30] sm:$0xf]
    %v199 = vld [vmem:[#allocation5 + $0x34] sm:$0xf]
    %v200 = vld [vmem:[#allocation5 + $0x38] sm:$0xf]
    %v201 = vld [vmem:[#allocation5 + $0x3c] sm:$0xf]
    %v202 = vld [vmem:[%s4] sm:$0x1]
    %v204 = vlaneseq
    %v205 = vshrl.u32 %v204, 7
    %v206 = vsub.s32 0, %v205
    %v207 = vrot.slane %v202, %v206
    %v225 = vunpack.c.l.b16 %v186
    %v226 = vunpack.c.l.b16 %v187
    %v227 = vunpack.c.l.b16 %v188
    %v228 = vunpack.c.l.b16 %v189
    %v229 = vunpack.c.l.b16 %v190
    %v230 = vunpack.c.l.b16 %v191
    %v231 = vunpack.c.l.b16 %v192
    %v232 = vunpack.c.l.b16 %v193
    %v233 = vunpack.c.l.b16 %v194
    %v234 = vunpack.c.l.b16 %v195
    %v235 = vunpack.c.l.b16 %v196
    %v236 = vunpack.c.l.b16 %v197
    %v237 = vunpack.c.l.b16 %v198
    %v238 = vunpack.c.l.b16 %v199
    %v239 = vunpack.c.l.b16 %v200
    %v240 = vunpack.c.l.b16 %v201
    %v241 = vpack.c.b16 %v226, %v225
    %v242 = vpack.c.b16 %v228, %v227
    %v243 = vpack.c.b16 %v230, %v229
    %v244 = vpack.c.b16 %v232, %v231
    %v245 = vpack.c.b16 %v234, %v233
    %v246 = vpack.c.b16 %v236, %v235
    %v247 = vpack.c.b16 %v238, %v237
    %v248 = vpack.c.b16 %v240, %v239
    %257 = vmatprep.subr.bf16.mxu0 0
    %258 = vmatpush1.bf16.msra.mxu0 %v241
    %259 = vmatprep.subr.bf16.mxu0 0
    %260 = vmatpush1.bf16.msra.mxu0 %v242
    %261 = vmatprep.subr.bf16.mxu0 0
    %262 = vmatpush1.bf16.msra.mxu0 %v243
    %263 = vmatprep.subr.bf16.mxu0 0
    %264 = vmatpush1.bf16.msra.mxu0 %v244
    %265 = vmatprep.subr.bf16.mxu0 0
    %266 = vmatpush1.bf16.msra.mxu0 %v245
    %267 = vmatprep.subr.bf16.mxu0 0
    %268 = vmatpush1.bf16.msra.mxu0 %v246
    %269 = vmatprep.subr.bf16.mxu0 0
    %270 = vmatpush1.bf16.msra.mxu0 %v247
    %271 = vmatprep.subr.bf16.mxu0 0
    %272 = vmatpush1.bf16.msra.mxu0 %v248
    %273 = vmatprep.subr.bf16.mxu0 0
    %274 = vmatpush1.bf16.msra.mxu0 0
    %275 = vmatprep.subr.bf16.mxu0 0
    %276 = vmatpush1.bf16.msra.mxu0 0
    %277 = vmatprep.subr.bf16.mxu0 0
    %278 = vmatpush1.bf16.msra.mxu0 0
    %279 = vmatprep.subr.bf16.mxu0 0
    %280 = vmatpush1.bf16.msra.mxu0 0
    %281 = vmatprep.subr.bf16.mxu0 0
    %282 = vmatpush1.bf16.msra.mxu0 0
    %283 = vmatprep.subr.bf16.mxu0 0
    %284 = vmatpush1.bf16.msra.mxu0 0
    %285 = vmatprep.subr.bf16.mxu0 0
    %286 = vmatpush1.bf16.msra.mxu0 0
    %287 = vmatprep.subr.bf16.mxu0 0
    %288 = vmatpush1.bf16.msra.mxu0 0
    %289 = vmatprep.mubr.bf16.mxu0 0
    %290 = vmatmul.mubr.bf16.gmra.mrb[0].mxu0 %v185
    %v291 = vpop.f32.mrb[0].mxu0
    %v292 = vadd.f32 %v207, %v291
    %v293 = vpop.f32.mrb[0].mxu0
    %v294 = vpop.f32.mrb[0].mxu0
    %v295 = vpop.f32.mrb[0].mxu0
    %296 = vdwg.mxu0
    %v297 = vmax.f32 %v292, 0.0
    %v298 = vpack.c.bf16 %v297, %v297
    %s299 = scalar_lea.vmem [#allocation5], 64
    %v300 = vld [vmem:[%s299] sm:$0xf]
    %v301 = vld [vmem:[%s299 + $0x4] sm:$0xf]
    %v302 = vld [vmem:[%s299 + $0x8] sm:$0xf]
    %v303 = vld [vmem:[%s299 + $0xc] sm:$0xf]
    %v304 = vld [vmem:[%s299 + $0x10] sm:$0xf]
    %v305 = vld [vmem:[%s299 + $0x14] sm:$0xf]
    %v306 = vld [vmem:[%s299 + $0x18] sm:$0xf]
    %v307 = vld [vmem:[%s299 + $0x1c] sm:$0xf]
    %v308 = vld [vmem:[%s299 + $0x20] sm:$0xf]
    %v309 = vld [vmem:[%s299 + $0x24] sm:$0xf]
    %v310 = vld [vmem:[%s299 + $0x28] sm:$0xf]
    %v311 = vld [vmem:[%s299 + $0x2c] sm:$0xf]
    %v312 = vld [vmem:[%s299 + $0x30] sm:$0xf]
    %v313 = vld [vmem:[%s299 + $0x34] sm:$0xf]
    %v314 = vld [vmem:[%s299 + $0x38] sm:$0xf]
    %v315 = vld [vmem:[%s299 + $0x3c] sm:$0xf]
    %s316 = scalar_lea.vmem %s4, 1
    %v317 = vld [vmem:[%s316] sm:$0x1]
    %v319 = vlaneseq
    %v320 = vshrl.u32 %v319, 7
    %v321 = vsub.s32 0, %v320
    %v322 = vrot.slane %v317, %v321
    %v340 = vunpack.c.l.b16 %v300
    %v341 = vunpack.c.l.b16 %v301
    %v342 = vunpack.c.l.b16 %v302
    %v343 = vunpack.c.l.b16 %v303
    %v344 = vunpack.c.l.b16 %v304
    %v345 = vunpack.c.l.b16 %v305
    %v346 = vunpack.c.l.b16 %v306
    %v347 = vunpack.c.l.b16 %v307
    %v348 = vunpack.c.l.b16 %v308
    %v349 = vunpack.c.l.b16 %v309
    %v350 = vunpack.c.l.b16 %v310
    %v351 = vunpack.c.l.b16 %v311
    %v352 = vunpack.c.l.b16 %v312
    %v353 = vunpack.c.l.b16 %v313
    %v354 = vunpack.c.l.b16 %v314
    %v355 = vunpack.c.l.b16 %v315
    %v356 = vpack.c.b16 %v341, %v340
    %v357 = vpack.c.b16 %v343, %v342
    %v358 = vpack.c.b16 %v345, %v344
    %v359 = vpack.c.b16 %v347, %v346
    %v360 = vpack.c.b16 %v349, %v348
    %v361 = vpack.c.b16 %v351, %v350
    %v362 = vpack.c.b16 %v353, %v352
    %v363 = vpack.c.b16 %v355, %v354
    %372 = vmatprep.subr.bf16.mxu0 0
    %373 = vmatpush1.bf16.msra.mxu0 %v356
    %374 = vmatprep.subr.bf16.mxu0 0
    %375 = vmatpush1.bf16.msra.mxu0 %v357
    %376 = vmatprep.subr.bf16.mxu0 0
    %377 = vmatpush1.bf16.msra.mxu0 %v358
    %378 = vmatprep.subr.bf16.mxu0 0
    %379 = vmatpush1.bf16.msra.mxu0 %v359
    %380 = vmatprep.subr.bf16.mxu0 0
    %381 = vmatpush1.bf16.msra.mxu0 %v360
    %382 = vmatprep.subr.bf16.mxu0 0
    %383 = vmatpush1.bf16.msra.mxu0 %v361
    %384 = vmatprep.subr.bf16.mxu0 0
    %385 = vmatpush1.bf16.msra.mxu0 %v362
    %386 = vmatprep.subr.bf16.mxu0 0
    %387 = vmatpush1.bf16.msra.mxu0 %v363
    %388 = vmatprep.subr.bf16.mxu0 0
    %389 = vmatpush1.bf16.msra.mxu0 0
    %390 = vmatprep.subr.bf16.mxu0 0
    %391 = vmatpush1.bf16.msra.mxu0 0
    %392 = vmatprep.subr.bf16.mxu0 0
    %393 = vmatpush1.bf16.msra.mxu0 0
    %394 = vmatprep.subr.bf16.mxu0 0
    %395 = vmatpush1.bf16.msra.mxu0 0
    %396 = vmatprep.subr.bf16.mxu0 0
    %397 = vmatpush1.bf16.msra.mxu0 0
    %398 = vmatprep.subr.bf16.mxu0 0
    %399 = vmatpush1.bf16.msra.mxu0 0
    %400 = vmatprep.subr.bf16.mxu0 0
    %401 = vmatpush1.bf16.msra.mxu0 0
    %402 = vmatprep.subr.bf16.mxu0 0
    %403 = vmatpush1.bf16.msra.mxu0 0
    %404 = vmatprep.mubr.bf16.mxu0 0
    %405 = vmatmul.mubr.bf16.gmra.mrb[0].mxu0 %v298
    %v406 = vpop.f32.mrb[0].mxu0
    %v407 = vadd.f32 %v322, %v406
    %v408 = vpop.f32.mrb[0].mxu0
    %v409 = vpop.f32.mrb[0].mxu0
    %v410 = vpop.f32.mrb[0].mxu0
    %411 = vdwg.mxu0
    %v412 = vmax.f32 %v407, 0.0
    %v413 = vpack.c.bf16 %v412, %v412
    %s414 = scalar_lea.vmem [#allocation5], 128
    %v415 = vld [vmem:[%s414] sm:$0xf]
    %v416 = vld [vmem:[%s414 + $0x4] sm:$0xf]
    %v417 = vld [vmem:[%s414 + $0x8] sm:$0xf]
    %v418 = vld [vmem:[%s414 + $0xc] sm:$0xf]
    %v419 = vld [vmem:[%s414 + $0x10] sm:$0xf]
    %v420 = vld [vmem:[%s414 + $0x14] sm:$0xf]
    %v421 = vld [vmem:[%s414 + $0x18] sm:$0xf]
    %v422 = vld [vmem:[%s414 + $0x1c] sm:$0xf]
    %v423 = vld [vmem:[%s414 + $0x20] sm:$0xf]
    %v424 = vld [vmem:[%s414 + $0x24] sm:$0xf]
    %v425 = vld [vmem:[%s414 + $0x28] sm:$0xf]
    %v426 = vld [vmem:[%s414 + $0x2c] sm:$0xf]
    %v427 = vld [vmem:[%s414 + $0x30] sm:$0xf]
    %v428 = vld [vmem:[%s414 + $0x34] sm:$0xf]
    %v429 = vld [vmem:[%s414 + $0x38] sm:$0xf]
    %v430 = vld [vmem:[%s414 + $0x3c] sm:$0xf]
    %s431 = scalar_lea.vmem %s4, 2
    %v432 = vld [vmem:[%s431] sm:$0x1]
    %v434 = vlaneseq
    %v435 = vshrl.u32 %v434, 7
    %v436 = vsub.s32 0, %v435
    %v437 = vrot.slane %v432, %v436
    %v455 = vunpack.c.l.b16 %v415
    %v456 = vunpack.c.l.b16 %v416
    %v457 = vunpack.c.l.b16 %v417
    %v458 = vunpack.c.l.b16 %v418
    %v459 = vunpack.c.l.b16 %v419
    %v460 = vunpack.c.l.b16 %v420
    %v461 = vunpack.c.l.b16 %v421
    %v462 = vunpack.c.l.b16 %v422
    %v463 = vunpack.c.l.b16 %v423
    %v464 = vunpack.c.l.b16 %v424
    %v465 = vunpack.c.l.b16 %v425
    %v466 = vunpack.c.l.b16 %v426
    %v467 = vunpack.c.l.b16 %v427
    %v468 = vunpack.c.l.b16 %v428
    %v469 = vunpack.c.l.b16 %v429
    %v470 = vunpack.c.l.b16 %v430
    %v471 = vpack.c.b16 %v456, %v455
    %v472 = vpack.c.b16 %v458, %v457
    %v473 = vpack.c.b16 %v460, %v459
    %v474 = vpack.c.b16 %v462, %v461
    %v475 = vpack.c.b16 %v464, %v463
    %v476 = vpack.c.b16 %v466, %v465
    %v477 = vpack.c.b16 %v468, %v467
    %v478 = vpack.c.b16 %v470, %v469
    %487 = vmatprep.subr.bf16.mxu0 0
    %488 = vmatpush1.bf16.msra.mxu0 %v471
    %489 = vmatprep.subr.bf16.mxu0 0
    %490 = vmatpush1.bf16.msra.mxu0 %v472
    %491 = vmatprep.subr.bf16.mxu0 0
    %492 = vmatpush1.bf16.msra.mxu0 %v473
    %493 = vmatprep.subr.bf16.mxu0 0
    %494 = vmatpush1.bf16.msra.mxu0 %v474
    %495 = vmatprep.subr.bf16.mxu0 0
    %496 = vmatpush1.bf16.msra.mxu0 %v475
    %497 = vmatprep.subr.bf16.mxu0 0
    %498 = vmatpush1.bf16.msra.mxu0 %v476
    %499 = vmatprep.subr.bf16.mxu0 0
    %500 = vmatpush1.bf16.msra.mxu0 %v477
    %501 = vmatprep.subr.bf16.mxu0 0
    %502 = vmatpush1.bf16.msra.mxu0 %v478
    %503 = vmatprep.subr.bf16.mxu0 0
    %504 = vmatpush1.bf16.msra.mxu0 0
    %505 = vmatprep.subr.bf16.mxu0 0
    %506 = vmatpush1.bf16.msra.mxu0 0
    %507 = vmatprep.subr.bf16.mxu0 0
    %508 = vmatpush1.bf16.msra.mxu0 0
    %509 = vmatprep.subr.bf16.mxu0 0
    %510 = vmatpush1.bf16.msra.mxu0 0
    %511 = vmatprep.subr.bf16.mxu0 0
    %512 = vmatpush1.bf16.msra.mxu0 0
    %513 = vmatprep.subr.bf16.mxu0 0
    %514 = vmatpush1.bf16.msra.mxu0 0
    %515 = vmatprep.subr.bf16.mxu0 0
    %516 = vmatpush1.bf16.msra.mxu0 0
    %517 = vmatprep.subr.bf16.mxu0 0
    %518 = vmatpush1.bf16.msra.mxu0 0
    %519 = vmatprep.mubr.bf16.mxu0 0
    %520 = vmatmul.mubr.bf16.gmra.mrb[0].mxu0 %v413
    %v521 = vpop.f32.mrb[0].mxu0
    %v522 = vadd.f32 %v437, %v521
    %v523 = vpop.f32.mrb[0].mxu0
    %v524 = vpop.f32.mrb[0].mxu0
    %v525 = vpop.f32.mrb[0].mxu0
    %526 = vdwg.mxu0
    %v527 = vmax.f32 %v522, 0.0
    %v528 = vpack.c.bf16 %v527, %v527
    %v529 = vld [vmem:[#allocation7] sm:$0xf]
    %v530 = vld [vmem:[#allocation7 + $0x4] sm:$0xf]
    %v531 = vld [vmem:[#allocation7 + $0x8] sm:$0xf]
    %v532 = vld [vmem:[#allocation7 + $0xc] sm:$0xf]
    %v533 = vld [vmem:[#allocation7 + $0x10] sm:$0xf]
    %v534 = vld [vmem:[#allocation7 + $0x14] sm:$0xf]
    %v535 = vld [vmem:[#allocation7 + $0x18] sm:$0xf]
    %v536 = vld [vmem:[#allocation7 + $0x1c] sm:$0xf]
    %v537 = vld [vmem:[#allocation7 + $0x20] sm:$0xf]
    %v538 = vld [vmem:[#allocation7 + $0x24] sm:$0xf]
    %v539 = vld [vmem:[#allocation7 + $0x28] sm:$0xf]
    %v540 = vld [vmem:[#allocation7 + $0x2c] sm:$0xf]
    %v541 = vld [vmem:[#allocation7 + $0x30] sm:$0xf]
    %v542 = vld [vmem:[#allocation7 + $0x34] sm:$0xf]
    %v543 = vld [vmem:[#allocation7 + $0x38] sm:$0xf]
    %v544 = vld [vmem:[#allocation7 + $0x3c] sm:$0xf]
    %v561 = vunpack.c.l.b16 %v529
    %v562 = vunpack.c.l.b16 %v530
    %v563 = vunpack.c.l.b16 %v531
    %v564 = vunpack.c.l.b16 %v532
    %v565 = vunpack.c.l.b16 %v533
    %v566 = vunpack.c.l.b16 %v534
    %v567 = vunpack.c.l.b16 %v535
    %v568 = vunpack.c.l.b16 %v536
    %v569 = vunpack.c.l.b16 %v537
    %v570 = vunpack.c.l.b16 %v538
    %v571 = vunpack.c.l.b16 %v539
    %v572 = vunpack.c.l.b16 %v540
    %v573 = vunpack.c.l.b16 %v541
    %v574 = vunpack.c.l.b16 %v542
    %v575 = vunpack.c.l.b16 %v543
    %v576 = vunpack.c.l.b16 %v544
    %v577 = vpack.c.b16 %v562, %v561
    %v578 = vpack.c.b16 %v564, %v563
    %v579 = vpack.c.b16 %v566, %v565
    %v580 = vpack.c.b16 %v568, %v567
    %v581 = vpack.c.b16 %v570, %v569
    %v582 = vpack.c.b16 %v572, %v571
    %v583 = vpack.c.b16 %v574, %v573
    %v584 = vpack.c.b16 %v576, %v575
    %593 = vmatprep.subr.bf16.mxu0 0
    %594 = vmatpush1.bf16.msra.mxu0 %v577
    %595 = vmatprep.subr.bf16.mxu0 0
    %596 = vmatpush1.bf16.msra.mxu0 %v578
    %597 = vmatprep.subr.bf16.mxu0 0
    %598 = vmatpush1.bf16.msra.mxu0 %v579
    %599 = vmatprep.subr.bf16.mxu0 0
    %600 = vmatpush1.bf16.msra.mxu0 %v580
    %601 = vmatprep.subr.bf16.mxu0 0
    %602 = vmatpush1.bf16.msra.mxu0 %v581
    %603 = vmatprep.subr.bf16.mxu0 0
    %604 = vmatpush1.bf16.msra.mxu0 %v582
    %605 = vmatprep.subr.bf16.mxu0 0
    %606 = vmatpush1.bf16.msra.mxu0 %v583
    %607 = vmatprep.subr.bf16.mxu0 0
    %608 = vmatpush1.bf16.msra.mxu0 %v584
    %609 = vmatprep.subr.bf16.mxu0 0
    %610 = vmatpush1.bf16.msra.mxu0 0
    %611 = vmatprep.subr.bf16.mxu0 0
    %612 = vmatpush1.bf16.msra.mxu0 0
    %613 = vmatprep.subr.bf16.mxu0 0
    %614 = vmatpush1.bf16.msra.mxu0 0
    %615 = vmatprep.subr.bf16.mxu0 0
    %616 = vmatpush1.bf16.msra.mxu0 0
    %617 = vmatprep.subr.bf16.mxu0 0
    %618 = vmatpush1.bf16.msra.mxu0 0
    %619 = vmatprep.subr.bf16.mxu0 0
    %620 = vmatpush1.bf16.msra.mxu0 0
    %621 = vmatprep.subr.bf16.mxu0 0
    %622 = vmatpush1.bf16.msra.mxu0 0
    %623 = vmatprep.subr.bf16.mxu0 0
    %624 = vmatpush1.bf16.msra.mxu0 0
    %625 = vmatprep.mubr.bf16.mxu0 0
    %626 = vmatmul.mubr.bf16.gmra.mrb[0].mxu0 %v528
    %v627 = vpop.f32.mrb[0].mxu0
    %v628 = vadd.f32 0.0, %v627
    %v629 = vpop.f32.mrb[0].mxu0
    %v630 = vpop.f32.mrb[0].mxu0
    %v631 = vpop.f32.mrb[0].mxu0
    %632 = vdwg.mxu0
    %633 = vst [vmem:[#allocation2] sm:$0xff] %v628
    %s634 = scalar_lea.vmem [#allocation3], 24
    %v635 = vld [vmem:[%s634] sm:$0xf]
    %v636 = vld [vmem:[%s634 + $0x4] sm:$0xf]
    %v637 = vld [vmem:[%s634 + $0x8] sm:$0xf]
    %v638 = vld [vmem:[%s634 + $0xc] sm:$0xf]
    %v639 = vld [vmem:[%s634 + $0x10] sm:$0xf]
    %v640 = vld [vmem:[%s634 + $0x14] sm:$0xf]
    %s641 = scalar_lea.vmem %s2, 1
    %v642 = vld [vmem:[%s641] sm:$0x1]
    %v644 = vlaneseq
    %v645 = vshrl.u32 %v644, 7
    %v646 = vsub.s32 0, %v645
    %v647 = vrot.slane %v642, %v646
    %v655 = vunpack.c.l.b16 %v635
    %v656 = vunpack.c.l.b16 %v636
    %v657 = vunpack.c.l.b16 %v637
    %v658 = vunpack.c.l.b16 %v638
    %v659 = vunpack.c.l.b16 %v639
    %v660 = vunpack.c.l.b16 %v640
    %v661 = vpack.c.b16 %v656, %v655
    %v662 = vpack.c.b16 %v658, %v657
    %v663 = vpack.c.b16 %v660, %v659
    %667 = vmatprep.subr.bf16.mxu0 0
    %668 = vmatpush1.bf16.msra.mxu0 %v661
    %669 = vmatprep.subr.bf16.mxu0 0
    %670 = vmatpush1.bf16.msra.mxu0 %v662
    %671 = vmatprep.subr.bf16.mxu0 0
    %672 = vmatpush1.bf16.msra.mxu0 %v663
    %673 = vmatprep.subr.bf16.mxu0 0
    %674 = vmatpush1.bf16.msra.mxu0 0
    %675 = vmatprep.subr.bf16.mxu0 0
    %676 = vmatpush1.bf16.msra.mxu0 0
    %677 = vmatprep.subr.bf16.mxu0 0
    %678 = vmatpush1.bf16.msra.mxu0 0
    %679 = vmatprep.subr.bf16.mxu0 0
    %680 = vmatpush1.bf16.msra.mxu0 0
    %681 = vmatprep.subr.bf16.mxu0 0
    %682 = vmatpush1.bf16.msra.mxu0 0
    %683 = vmatprep.subr.bf16.mxu0 0
    %684 = vmatpush1.bf16.msra.mxu0 0
    %685 = vmatprep.subr.bf16.mxu0 0
    %686 = vmatpush1.bf16.msra.mxu0 0
    %687 = vmatprep.subr.bf16.mxu0 0
    %688 = vmatpush1.bf16.msra.mxu0 0
    %689 = vmatprep.subr.bf16.mxu0 0
    %690 = vmatpush1.bf16.msra.mxu0 0
    %691 = vmatprep.subr.bf16.mxu0 0
    %692 = vmatpush1.bf16.msra.mxu0 0
    %693 = vmatprep.subr.bf16.mxu0 0
    %694 = vmatpush1.bf16.msra.mxu0 0
    %695 = vmatprep.subr.bf16.mxu0 0
    %696 = vmatpush1.bf16.msra.mxu0 0
    %697 = vmatprep.subr.bf16.mxu0 0
    %698 = vmatpush1.bf16.msra.mxu0 0
    %699 = vmatprep.mubr.bf16.mxu0 0
    %700 = vmatmul.mubr.bf16.gmra.mrb[0].mxu0 %v142
    %v701 = vpop.f32.mrb[0].mxu0
    %v702 = vadd.f32 %v647, %v701
    %v703 = vpop.f32.mrb[0].mxu0
    %v704 = vpop.f32.mrb[0].mxu0
    %v705 = vpop.f32.mrb[0].mxu0
    %706 = vdwg.mxu0
    %v707 = vmax.f32 %v702, 0.0
    %v708 = vpack.c.bf16 %v707, %v707
    %s709 = scalar_lea.vmem [#allocation5], 192
    %v710 = vld [vmem:[%s709] sm:$0xf]
    %v711 = vld [vmem:[%s709 + $0x4] sm:$0xf]
    %v712 = vld [vmem:[%s709 + $0x8] sm:$0xf]
    %v713 = vld [vmem:[%s709 + $0xc] sm:$0xf]
    %v714 = vld [vmem:[%s709 + $0x10] sm:$0xf]
    %v715 = vld [vmem:[%s709 + $0x14] sm:$0xf]
    %v716 = vld [vmem:[%s709 + $0x18] sm:$0xf]
    %v717 = vld [vmem:[%s709 + $0x1c] sm:$0xf]
    %v718 = vld [vmem:[%s709 + $0x20] sm:$0xf]
    %v719 = vld [vmem:[%s709 + $0x24] sm:$0xf]
    %v720 = vld [vmem:[%s709 + $0x28] sm:$0xf]
    %v721 = vld [vmem:[%s709 + $0x2c] sm:$0xf]
    %v722 = vld [vmem:[%s709 + $0x30] sm:$0xf]
    %v723 = vld [vmem:[%s709 + $0x34] sm:$0xf]
    %v724 = vld [vmem:[%s709 + $0x38] sm:$0xf]
    %v725 = vld [vmem:[%s709 + $0x3c] sm:$0xf]
    %s726 = scalar_lea.vmem %s4, 3
    %v727 = vld [vmem:[%s726] sm:$0x1]
    %v729 = vlaneseq
    %v730 = vshrl.u32 %v729, 7
    %v731 = vsub.s32 0, %v730
    %v732 = vrot.slane %v727, %v731
    %v750 = vunpack.c.l.b16 %v710
    %v751 = vunpack.c.l.b16 %v711
    %v752 = vunpack.c.l.b16 %v712
    %v753 = vunpack.c.l.b16 %v713
    %v754 = vunpack.c.l.b16 %v714
    %v755 = vunpack.c.l.b16 %v715
    %v756 = vunpack.c.l.b16 %v716
    %v757 = vunpack.c.l.b16 %v717
    %v758 = vunpack.c.l.b16 %v718
    %v759 = vunpack.c.l.b16 %v719
    %v760 = vunpack.c.l.b16 %v720
    %v761 = vunpack.c.l.b16 %v721
    %v762 = vunpack.c.l.b16 %v722
    %v763 = vunpack.c.l.b16 %v723
    %v764 = vunpack.c.l.b16 %v724
    %v765 = vunpack.c.l.b16 %v725
    %v766 = vpack.c.b16 %v751, %v750
    %v767 = vpack.c.b16 %v753, %v752
    %v768 = vpack.c.b16 %v755, %v754
    %v769 = vpack.c.b16 %v757, %v756
    %v770 = vpack.c.b16 %v759, %v758
    %v771 = vpack.c.b16 %v761, %v760
    %v772 = vpack.c.b16 %v763, %v762
    %v773 = vpack.c.b16 %v765, %v764
    %782 = vmatprep.subr.bf16.mxu0 0
    %783 = vmatpush1.bf16.msra.mxu0 %v766
    %784 = vmatprep.subr.bf16.mxu0 0
    %785 = vmatpush1.bf16.msra.mxu0 %v767
    %786 = vmatprep.subr.bf16.mxu0 0
    %787 = vmatpush1.bf16.msra.mxu0 %v768
    %788 = vmatprep.subr.bf16.mxu0 0
    %789 = vmatpush1.bf16.msra.mxu0 %v769
    %790 = vmatprep.subr.bf16.mxu0 0
    %791 = vmatpush1.bf16.msra.mxu0 %v770
    %792 = vmatprep.subr.bf16.mxu0 0
    %793 = vmatpush1.bf16.msra.mxu0 %v771
    %794 = vmatprep.subr.bf16.mxu0 0
    %795 = vmatpush1.bf16.msra.mxu0 %v772
    %796 = vmatprep.subr.bf16.mxu0 0
    %797 = vmatpush1.bf16.msra.mxu0 %v773
    %798 = vmatprep.subr.bf16.mxu0 0
    %799 = vmatpush1.bf16.msra.mxu0 0
    %800 = vmatprep.subr.bf16.mxu0 0
    %801 = vmatpush1.bf16.msra.mxu0 0
    %802 = vmatprep.subr.bf16.mxu0 0
    %803 = vmatpush1.bf16.msra.mxu0 0
    %804 = vmatprep.subr.bf16.mxu0 0
    %805 = vmatpush1.bf16.msra.mxu0 0
    %806 = vmatprep.subr.bf16.mxu0 0
    %807 = vmatpush1.bf16.msra.mxu0 0
    %808 = vmatprep.subr.bf16.mxu0 0
    %809 = vmatpush1.bf16.msra.mxu0 0
    %810 = vmatprep.subr.bf16.mxu0 0
    %811 = vmatpush1.bf16.msra.mxu0 0
    %812 = vmatprep.subr.bf16.mxu0 0
    %813 = vmatpush1.bf16.msra.mxu0 0
    %814 = vmatprep.mubr.bf16.mxu0 0
    %815 = vmatmul.mubr.bf16.gmra.mrb[0].mxu0 %v708
    %v816 = vpop.f32.mrb[0].mxu0
    %v817 = vadd.f32 %v732, %v816
    %v818 = vpop.f32.mrb[0].mxu0
    %v819 = vpop.f32.mrb[0].mxu0
    %v820 = vpop.f32.mrb[0].mxu0
    %821 = vdwg.mxu0
    %v822 = vmax.f32 %v817, 0.0
    %v823 = vpack.c.bf16 %v822, %v822
    %s824 = scalar_lea.vmem [#allocation5], 256
    %v825 = vld [vmem:[%s824] sm:$0xf]
    %v826 = vld [vmem:[%s824 + $0x4] sm:$0xf]
    %v827 = vld [vmem:[%s824 + $0x8] sm:$0xf]
    %v828 = vld [vmem:[%s824 + $0xc] sm:$0xf]
    %v829 = vld [vmem:[%s824 + $0x10] sm:$0xf]
    %v830 = vld [vmem:[%s824 + $0x14] sm:$0xf]
    %v831 = vld [vmem:[%s824 + $0x18] sm:$0xf]
    %v832 = vld [vmem:[%s824 + $0x1c] sm:$0xf]
    %v833 = vld [vmem:[%s824 + $0x20] sm:$0xf]
    %v834 = vld [vmem:[%s824 + $0x24] sm:$0xf]
    %v835 = vld [vmem:[%s824 + $0x28] sm:$0xf]
    %v836 = vld [vmem:[%s824 + $0x2c] sm:$0xf]
    %v837 = vld [vmem:[%s824 + $0x30] sm:$0xf]
    %v838 = vld [vmem:[%s824 + $0x34] sm:$0xf]
    %v839 = vld [vmem:[%s824 + $0x38] sm:$0xf]
    %v840 = vld [vmem:[%s824 + $0x3c] sm:$0xf]
    %s841 = scalar_lea.vmem %s4, 4
    %v842 = vld [vmem:[%s841] sm:$0x1]
    %v844 = vlaneseq
    %v845 = vshrl.u32 %v844, 7
    %v846 = vsub.s32 0, %v845
    %v847 = vrot.slane %v842, %v846
    %v865 = vunpack.c.l.b16 %v825
    %v866 = vunpack.c.l.b16 %v826
    %v867 = vunpack.c.l.b16 %v827
    %v868 = vunpack.c.l.b16 %v828
    %v869 = vunpack.c.l.b16 %v829
    %v870 = vunpack.c.l.b16 %v830
    %v871 = vunpack.c.l.b16 %v831
    %v872 = vunpack.c.l.b16 %v832
    %v873 = vunpack.c.l.b16 %v833
    %v874 = vunpack.c.l.b16 %v834
    %v875 = vunpack.c.l.b16 %v835
    %v876 = vunpack.c.l.b16 %v836
    %v877 = vunpack.c.l.b16 %v837
    %v878 = vunpack.c.l.b16 %v838
    %v879 = vunpack.c.l.b16 %v839
    %v880 = vunpack.c.l.b16 %v840
    %v881 = vpack.c.b16 %v866, %v865
    %v882 = vpack.c.b16 %v868, %v867
    %v883 = vpack.c.b16 %v870, %v869
    %v884 = vpack.c.b16 %v872, %v871
    %v885 = vpack.c.b16 %v874, %v873
    %v886 = vpack.c.b16 %v876, %v875
    %v887 = vpack.c.b16 %v878, %v877
    %v888 = vpack.c.b16 %v880, %v879
    %897 = vmatprep.subr.bf16.mxu0 0
    %898 = vmatpush1.bf16.msra.mxu0 %v881
    %899 = vmatprep.subr.bf16.mxu0 0
    %900 = vmatpush1.bf16.msra.mxu0 %v882
    %901 = vmatprep.subr.bf16.mxu0 0
    %902 = vmatpush1.bf16.msra.mxu0 %v883
    %903 = vmatprep.subr.bf16.mxu0 0
    %904 = vmatpush1.bf16.msra.mxu0 %v884
    %905 = vmatprep.subr.bf16.mxu0 0
    %906 = vmatpush1.bf16.msra.mxu0 %v885
    %907 = vmatprep.subr.bf16.mxu0 0
    %908 = vmatpush1.bf16.msra.mxu0 %v886
    %909 = vmatprep.subr.bf16.mxu0 0
    %910 = vmatpush1.bf16.msra.mxu0 %v887
    %911 = vmatprep.subr.bf16.mxu0 0
    %912 = vmatpush1.bf16.msra.mxu0 %v888
    %913 = vmatprep.subr.bf16.mxu0 0
    %914 = vmatpush1.bf16.msra.mxu0 0
    %915 = vmatprep.subr.bf16.mxu0 0
    %916 = vmatpush1.bf16.msra.mxu0 0
    %917 = vmatprep.subr.bf16.mxu0 0
    %918 = vmatpush1.bf16.msra.mxu0 0
    %919 = vmatprep.subr.bf16.mxu0 0
    %920 = vmatpush1.bf16.msra.mxu0 0
    %921 = vmatprep.subr.bf16.mxu0 0
    %922 = vmatpush1.bf16.msra.mxu0 0
    %923 = vmatprep.subr.bf16.mxu0 0
    %924 = vmatpush1.bf16.msra.mxu0 0
    %925 = vmatprep.subr.bf16.mxu0 0
    %926 = vmatpush1.bf16.msra.mxu0 0
    %927 = vmatprep.subr.bf16.mxu0 0
    %928 = vmatpush1.bf16.msra.mxu0 0
    %929 = vmatprep.mubr.bf16.mxu0 0
    %930 = vmatmul.mubr.bf16.gmra.mrb[0].mxu0 %v823
    %v931 = vpop.f32.mrb[0].mxu0
    %v932 = vadd.f32 %v847, %v931
    %v933 = vpop.f32.mrb[0].mxu0
    %v934 = vpop.f32.mrb[0].mxu0
    %v935 = vpop.f32.mrb[0].mxu0
    %936 = vdwg.mxu0
    %v937 = vmax.f32 %v932, 0.0
    %v938 = vpack.c.bf16 %v937, %v937
    %s939 = scalar_lea.vmem [#allocation5], 320
    %v940 = vld [vmem:[%s939] sm:$0xf]
    %v941 = vld [vmem:[%s939 + $0x4] sm:$0xf]
    %v942 = vld [vmem:[%s939 + $0x8] sm:$0xf]
    %v943 = vld [vmem:[%s939 + $0xc] sm:$0xf]
    %v944 = vld [vmem:[%s939 + $0x10] sm:$0xf]
    %v945 = vld [vmem:[%s939 + $0x14] sm:$0xf]
    %v946 = vld [vmem:[%s939 + $0x18] sm:$0xf]
    %v947 = vld [vmem:[%s939 + $0x1c] sm:$0xf]
    %v948 = vld [vmem:[%s939 + $0x20] sm:$0xf]
    %v949 = vld [vmem:[%s939 + $0x24] sm:$0xf]
    %v950 = vld [vmem:[%s939 + $0x28] sm:$0xf]
    %v951 = vld [vmem:[%s939 + $0x2c] sm:$0xf]
    %v952 = vld [vmem:[%s939 + $0x30] sm:$0xf]
    %v953 = vld [vmem:[%s939 + $0x34] sm:$0xf]
    %v954 = vld [vmem:[%s939 + $0x38] sm:$0xf]
    %v955 = vld [vmem:[%s939 + $0x3c] sm:$0xf]
    %s956 = scalar_lea.vmem %s4, 5
    %v957 = vld [vmem:[%s956] sm:$0x1]
    %v959 = vlaneseq
    %v960 = vshrl.u32 %v959, 7
    %v961 = vsub.s32 0, %v960
    %v962 = vrot.slane %v957, %v961
    %v980 = vunpack.c.l.b16 %v940
    %v981 = vunpack.c.l.b16 %v941
    %v982 = vunpack.c.l.b16 %v942
    %v983 = vunpack.c.l.b16 %v943
    %v984 = vunpack.c.l.b16 %v944
    %v985 = vunpack.c.l.b16 %v945
    %v986 = vunpack.c.l.b16 %v946
    %v987 = vunpack.c.l.b16 %v947
    %v988 = vunpack.c.l.b16 %v948
    %v989 = vunpack.c.l.b16 %v949
    %v990 = vunpack.c.l.b16 %v950
    %v991 = vunpack.c.l.b16 %v951
    %v992 = vunpack.c.l.b16 %v952
    %v993 = vunpack.c.l.b16 %v953
    %v994 = vunpack.c.l.b16 %v954
    %v995 = vunpack.c.l.b16 %v955
    %v996 = vpack.c.b16 %v981, %v980
    %v997 = vpack.c.b16 %v983, %v982
    %v998 = vpack.c.b16 %v985, %v984
    %v999 = vpack.c.b16 %v987, %v986
    %v1000 = vpack.c.b16 %v989, %v988
    %v1001 = vpack.c.b16 %v991, %v990
    %v1002 = vpack.c.b16 %v993, %v992
    %v1003 = vpack.c.b16 %v995, %v994
    %1012 = vmatprep.subr.bf16.mxu0 0
    %1013 = vmatpush1.bf16.msra.mxu0 %v996
    %1014 = vmatprep.subr.bf16.mxu0 0
    %1015 = vmatpush1.bf16.msra.mxu0 %v997
    %1016 = vmatprep.subr.bf16.mxu0 0
    %1017 = vmatpush1.bf16.msra.mxu0 %v998
    %1018 = vmatprep.subr.bf16.mxu0 0
    %1019 = vmatpush1.bf16.msra.mxu0 %v999
    %1020 = vmatprep.subr.bf16.mxu0 0
    %1021 = vmatpush1.bf16.msra.mxu0 %v1000
    %1022 = vmatprep.subr.bf16.mxu0 0
    %1023 = vmatpush1.bf16.msra.mxu0 %v1001
    %1024 = vmatprep.subr.bf16.mxu0 0
    %1025 = vmatpush1.bf16.msra.mxu0 %v1002
    %1026 = vmatprep.subr.bf16.mxu0 0
    %1027 = vmatpush1.bf16.msra.mxu0 %v1003
    %1028 = vmatprep.subr.bf16.mxu0 0
    %1029 = vmatpush1.bf16.msra.mxu0 0
    %1030 = vmatprep.subr.bf16.mxu0 0
    %1031 = vmatpush1.bf16.msra.mxu0 0
    %1032 = vmatprep.subr.bf16.mxu0 0
    %1033 = vmatpush1.bf16.msra.mxu0 0
    %1034 = vmatprep.subr.bf16.mxu0 0
    %1035 = vmatpush1.bf16.msra.mxu0 0
    %1036 = vmatprep.subr.bf16.mxu0 0
    %1037 = vmatpush1.bf16.msra.mxu0 0
    %1038 = vmatprep.subr.bf16.mxu0 0
    %1039 = vmatpush1.bf16.msra.mxu0 0
    %1040 = vmatprep.subr.bf16.mxu0 0
    %1041 = vmatpush1.bf16.msra.mxu0 0
    %1042 = vmatprep.subr.bf16.mxu0 0
    %1043 = vmatpush1.bf16.msra.mxu0 0
    %1044 = vmatprep.mubr.bf16.mxu0 0
    %1045 = vmatmul.mubr.bf16.gmra.mrb[0].mxu0 %v938
    %v1046 = vpop.f32.mrb[0].mxu0
    %v1047 = vadd.f32 %v962, %v1046
    %v1048 = vpop.f32.mrb[0].mxu0
    %v1049 = vpop.f32.mrb[0].mxu0
    %v1050 = vpop.f32.mrb[0].mxu0
    %1051 = vdwg.mxu0
    %v1052 = vmax.f32 %v1047, 0.0
    %v1053 = vpack.c.bf16 %v1052, %v1052
    %s1054 = scalar_lea.vmem [#allocation7], 64
    %v1055 = vld [vmem:[%s1054] sm:$0xf]
    %v1056 = vld [vmem:[%s1054 + $0x4] sm:$0xf]
    %v1057 = vld [vmem:[%s1054 + $0x8] sm:$0xf]
    %v1058 = vld [vmem:[%s1054 + $0xc] sm:$0xf]
    %v1059 = vld [vmem:[%s1054 + $0x10] sm:$0xf]
    %v1060 = vld [vmem:[%s1054 + $0x14] sm:$0xf]
    %v1061 = vld [vmem:[%s1054 + $0x18] sm:$0xf]
    %v1062 = vld [vmem:[%s1054 + $0x1c] sm:$0xf]
    %v1063 = vld [vmem:[%s1054 + $0x20] sm:$0xf]
    %v1064 = vld [vmem:[%s1054 + $0x24] sm:$0xf]
    %v1065 = vld [vmem:[%s1054 + $0x28] sm:$0xf]
    %v1066 = vld [vmem:[%s1054 + $0x2c] sm:$0xf]
    %v1067 = vld [vmem:[%s1054 + $0x30] sm:$0xf]
    %v1068 = vld [vmem:[%s1054 + $0x34] sm:$0xf]
    %v1069 = vld [vmem:[%s1054 + $0x38] sm:$0xf]
    %v1070 = vld [vmem:[%s1054 + $0x3c] sm:$0xf]
    %v1087 = vunpack.c.l.b16 %v1055
    %v1088 = vunpack.c.l.b16 %v1056
    %v1089 = vunpack.c.l.b16 %v1057
    %v1090 = vunpack.c.l.b16 %v1058
    %v1091 = vunpack.c.l.b16 %v1059
    %v1092 = vunpack.c.l.b16 %v1060
    %v1093 = vunpack.c.l.b16 %v1061
    %v1094 = vunpack.c.l.b16 %v1062
    %v1095 = vunpack.c.l.b16 %v1063
    %v1096 = vunpack.c.l.b16 %v1064
    %v1097 = vunpack.c.l.b16 %v1065
    %v1098 = vunpack.c.l.b16 %v1066
    %v1099 = vunpack.c.l.b16 %v1067
    %v1100 = vunpack.c.l.b16 %v1068
    %v1101 = vunpack.c.l.b16 %v1069
    %v1102 = vunpack.c.l.b16 %v1070
    %v1103 = vpack.c.b16 %v1088, %v1087
    %v1104 = vpack.c.b16 %v1090, %v1089
    %v1105 = vpack.c.b16 %v1092, %v1091
    %v1106 = vpack.c.b16 %v1094, %v1093
    %v1107 = vpack.c.b16 %v1096, %v1095
    %v1108 = vpack.c.b16 %v1098, %v1097
    %v1109 = vpack.c.b16 %v1100, %v1099
    %v1110 = vpack.c.b16 %v1102, %v1101
    %1119 = vmatprep.subr.bf16.mxu0 0
    %1120 = vmatpush1.bf16.msra.mxu0 %v1103
    %1121 = vmatprep.subr.bf16.mxu0 0
    %1122 = vmatpush1.bf16.msra.mxu0 %v1104
    %1123 = vmatprep.subr.bf16.mxu0 0
    %1124 = vmatpush1.bf16.msra.mxu0 %v1105
    %1125 = vmatprep.subr.bf16.mxu0 0
    %1126 = vmatpush1.bf16.msra.mxu0 %v1106
    %1127 = vmatprep.subr.bf16.mxu0 0
    %1128 = vmatpush1.bf16.msra.mxu0 %v1107
    %1129 = vmatprep.subr.bf16.mxu0 0
    %1130 = vmatpush1.bf16.msra.mxu0 %v1108
    %1131 = vmatprep.subr.bf16.mxu0 0
    %1132 = vmatpush1.bf16.msra.mxu0 %v1109
    %1133 = vmatprep.subr.bf16.mxu0 0
    %1134 = vmatpush1.bf16.msra.mxu0 %v1110
    %1135 = vmatprep.subr.bf16.mxu0 0
    %1136 = vmatpush1.bf16.msra.mxu0 0
    %1137 = vmatprep.subr.bf16.mxu0 0
    %1138 = vmatpush1.bf16.msra.mxu0 0
    %1139 = vmatprep.subr.bf16.mxu0 0
    %1140 = vmatpush1.bf16.msra.mxu0 0
    %1141 = vmatprep.subr.bf16.mxu0 0
    %1142 = vmatpush1.bf16.msra.mxu0 0
    %1143 = vmatprep.subr.bf16.mxu0 0
    %1144 = vmatpush1.bf16.msra.mxu0 0
    %1145 = vmatprep.subr.bf16.mxu0 0
    %1146 = vmatpush1.bf16.msra.mxu0 0
    %1147 = vmatprep.subr.bf16.mxu0 0
    %1148 = vmatpush1.bf16.msra.mxu0 0
    %1149 = vmatprep.subr.bf16.mxu0 0
    %1150 = vmatpush1.bf16.msra.mxu0 0
    %1151 = vmatprep.mubr.bf16.mxu0 0
    %1152 = vmatmul.mubr.bf16.gmra.mrb[0].mxu0 %v1053
    %v1153 = vpop.f32.mrb[0].mxu0
    %v1154 = vadd.f32 0.0, %v1153
    %v1155 = vpop.f32.mrb[0].mxu0
    %v1156 = vpop.f32.mrb[0].mxu0
    %v1157 = vpop.f32.mrb[0].mxu0
    %1158 = vdwg.mxu0
    %v1159 = vld [vmem:[#allocation2] sm:$0xff]
    %v1160 = vadd.f32 %v1159, %v1154
    %1161 = vst [vmem:[#allocation2] sm:$0xff] %v1160
    %s1162 = scalar_lea.vmem [#allocation3], 48
    %v1163 = vld [vmem:[%s1162] sm:$0xf]
    %v1164 = vld [vmem:[%s1162 + $0x4] sm:$0xf]
    %v1165 = vld [vmem:[%s1162 + $0x8] sm:$0xf]
    %v1166 = vld [vmem:[%s1162 + $0xc] sm:$0xf]
    %v1167 = vld [vmem:[%s1162 + $0x10] sm:$0xf]
    %v1168 = vld [vmem:[%s1162 + $0x14] sm:$0xf]
    %s1169 = scalar_lea.vmem %s2, 2
    %v1170 = vld [vmem:[%s1169] sm:$0x1]
    %v1172 = vlaneseq
    %v1173 = vshrl.u32 %v1172, 7
    %v1174 = vsub.s32 0, %v1173
    %v1175 = vrot.slane %v1170, %v1174
    %v1183 = vunpack.c.l.b16 %v1163
    %v1184 = vunpack.c.l.b16 %v1164
    %v1185 = vunpack.c.l.b16 %v1165
    %v1186 = vunpack.c.l.b16 %v1166
    %v1187 = vunpack.c.l.b16 %v1167
    %v1188 = vunpack.c.l.b16 %v1168
    %v1189 = vpack.c.b16 %v1184, %v1183
    %v1190 = vpack.c.b16 %v1186, %v1185
    %v1191 = vpack.c.b16 %v1188, %v1187
    %1195 = vmatprep.subr.bf16.mxu0 0
    %1196 = vmatpush1.bf16.msra.mxu0 %v1189
    %1197 = vmatprep.subr.bf16.mxu0 0
    %1198 = vmatpush1.bf16.msra.mxu0 %v1190
    %1199 = vmatprep.subr.bf16.mxu0 0
    %1200 = vmatpush1.bf16.msra.mxu0 %v1191
    %1201 = vmatprep.subr.bf16.mxu0 0
    %1202 = vmatpush1.bf16.msra.mxu0 0
    %1203 = vmatprep.subr.bf16.mxu0 0
    %1204 = vmatpush1.bf16.msra.mxu0 0
    %1205 = vmatprep.subr.bf16.mxu0 0
    %1206 = vmatpush1.bf16.msra.mxu0 0
    %1207 = vmatprep.subr.bf16.mxu0 0
    %1208 = vmatpush1.bf16.msra.mxu0 0
    %1209 = vmatprep.subr.bf16.mxu0 0
    %1210 = vmatpush1.bf16.msra.mxu0 0
    %1211 = vmatprep.subr.bf16.mxu0 0
    %1212 = vmatpush1.bf16.msra.mxu0 0
    %1213 = vmatprep.subr.bf16.mxu0 0
    %1214 = vmatpush1.bf16.msra.mxu0 0
    %1215 = vmatprep.subr.bf16.mxu0 0
    %1216 = vmatpush1.bf16.msra.mxu0 0
    %1217 = vmatprep.subr.bf16.mxu0 0
    %1218 = vmatpush1.bf16.msra.mxu0 0
    %1219 = vmatprep.subr.bf16.mxu0 0
    %1220 = vmatpush1.bf16.msra.mxu0 0
    %1221 = vmatprep.subr.bf16.mxu0 0
    %1222 = vmatpush1.bf16.msra.mxu0 0
    %1223 = vmatprep.subr.bf16.mxu0 0
    %1224 = vmatpush1.bf16.msra.mxu0 0
    %1225 = vmatprep.subr.bf16.mxu0 0
    %1226 = vmatpush1.bf16.msra.mxu0 0
    %1227 = vmatprep.mubr.bf16.mxu0 0
    %1228 = vmatmul.mubr.bf16.gmra.mrb[0].mxu0 %v142
    %v1229 = vpop.f32.mrb[0].mxu0
    %v1230 = vadd.f32 %v1175, %v1229
    %v1231 = vpop.f32.mrb[0].mxu0
    %v1232 = vpop.f32.mrb[0].mxu0
    %v1233 = vpop.f32.mrb[0].mxu0
    %1234 = vdwg.mxu0
    %v1235 = vmax.f32 %v1230, 0.0
    %v1236 = vpack.c.bf16 %v1235, %v1235
    %s1237 = scalar_lea.vmem [#allocation5], 384
    %v1238 = vld [vmem:[%s1237] sm:$0xf]
    %v1239 = vld [vmem:[%s1237 + $0x4] sm:$0xf]
    %v1240 = vld [vmem:[%s1237 + $0x8] sm:$0xf]
    %v1241 = vld [vmem:[%s1237 + $0xc] sm:$0xf]
    %v1242 = vld [vmem:[%s1237 + $0x10] sm:$0xf]
    %v1243 = vld [vmem:[%s1237 + $0x14] sm:$0xf]
    %v1244 = vld [vmem:[%s1237 + $0x18] sm:$0xf]
    %v1245 = vld [vmem:[%s1237 + $0x1c] sm:$0xf]
    %v1246 = vld [vmem:[%s1237 + $0x20] sm:$0xf]
    %v1247 = vld [vmem:[%s1237 + $0x24] sm:$0xf]
    %v1248 = vld [vmem:[%s1237 + $0x28] sm:$0xf]
    %v1249 = vld [vmem:[%s1237 + $0x2c] sm:$0xf]
    %v1250 = vld [vmem:[%s1237 + $0x30] sm:$0xf]
    %v1251 = vld [vmem:[%s1237 + $0x34] sm:$0xf]
    %v1252 = vld [vmem:[%s1237 + $0x38] sm:$0xf]
    %v1253 = vld [vmem:[%s1237 + $0x3c] sm:$0xf]
    %s1254 = scalar_lea.vmem %s4, 6
    %v1255 = vld [vmem:[%s1254] sm:$0x1]
    %v1257 = vlaneseq
    %v1258 = vshrl.u32 %v1257, 7
    %v1259 = vsub.s32 0, %v1258
    %v1260 = vrot.slane %v1255, %v1259
    %v1278 = vunpack.c.l.b16 %v1238
    %v1279 = vunpack.c.l.b16 %v1239
    %v1280 = vunpack.c.l.b16 %v1240
    %v1281 = vunpack.c.l.b16 %v1241
    %v1282 = vunpack.c.l.b16 %v1242
    %v1283 = vunpack.c.l.b16 %v1243
    %v1284 = vunpack.c.l.b16 %v1244
    %v1285 = vunpack.c.l.b16 %v1245
    %v1286 = vunpack.c.l.b16 %v1246
    %v1287 = vunpack.c.l.b16 %v1247
    %v1288 = vunpack.c.l.b16 %v1248
    %v1289 = vunpack.c.l.b16 %v1249
    %v1290 = vunpack.c.l.b16 %v1250
    %v1291 = vunpack.c.l.b16 %v1251
    %v1292 = vunpack.c.l.b16 %v1252
    %v1293 = vunpack.c.l.b16 %v1253
    %v1294 = vpack.c.b16 %v1279, %v1278
    %v1295 = vpack.c.b16 %v1281, %v1280
    %v1296 = vpack.c.b16 %v1283, %v1282
    %v1297 = vpack.c.b16 %v1285, %v1284
    %v1298 = vpack.c.b16 %v1287, %v1286
    %v1299 = vpack.c.b16 %v1289, %v1288
    %v1300 = vpack.c.b16 %v1291, %v1290
    %v1301 = vpack.c.b16 %v1293, %v1292
    %1310 = vmatprep.subr.bf16.mxu0 0
    %1311 = vmatpush1.bf16.msra.mxu0 %v1294
    %1312 = vmatprep.subr.bf16.mxu0 0
    %1313 = vmatpush1.bf16.msra.mxu0 %v1295
    %1314 = vmatprep.subr.bf16.mxu0 0
    %1315 = vmatpush1.bf16.msra.mxu0 %v1296
    %1316 = vmatprep.subr.bf16.mxu0 0
    %1317 = vmatpush1.bf16.msra.mxu0 %v1297
    %1318 = vmatprep.subr.bf16.mxu0 0
    %1319 = vmatpush1.bf16.msra.mxu0 %v1298
    %1320 = vmatprep.subr.bf16.mxu0 0
    %1321 = vmatpush1.bf16.msra.mxu0 %v1299
    %1322 = vmatprep.subr.bf16.mxu0 0
    %1323 = vmatpush1.bf16.msra.mxu0 %v1300
    %1324 = vmatprep.subr.bf16.mxu0 0
    %1325 = vmatpush1.bf16.msra.mxu0 %v1301
    %1326 = vmatprep.subr.bf16.mxu0 0
    %1327 = vmatpush1.bf16.msra.mxu0 0
    %1328 = vmatprep.subr.bf16.mxu0 0
    %1329 = vmatpush1.bf16.msra.mxu0 0
    %1330 = vmatprep.subr.bf16.mxu0 0
    %1331 = vmatpush1.bf16.msra.mxu0 0
    %1332 = vmatprep.subr.bf16.mxu0 0
    %1333 = vmatpush1.bf16.msra.mxu0 0
    %1334 = vmatprep.subr.bf16.mxu0 0
    %1335 = vmatpush1.bf16.msra.mxu0 0
    %1336 = vmatprep.subr.bf16.mxu0 0
    %1337 = vmatpush1.bf16.msra.mxu0 0
    %1338 = vmatprep.subr.bf16.mxu0 0
    %1339 = vmatpush1.bf16.msra.mxu0 0
    %1340 = vmatprep.subr.bf16.mxu0 0
    %1341 = vmatpush1.bf16.msra.mxu0 0
    %1342 = vmatprep.mubr.bf16.mxu0 0
    %1343 = vmatmul.mubr.bf16.gmra.mrb[0].mxu0 %v1236
    %v1344 = vpop.f32.mrb[0].mxu0
    %v1345 = vadd.f32 %v1260, %v1344
    %v1346 = vpop.f32.mrb[0].mxu0
    %v1347 = vpop.f32.mrb[0].mxu0
    %v1348 = vpop.f32.mrb[0].mxu0
    %1349 = vdwg.mxu0
    %v1350 = vmax.f32 %v1345, 0.0
    %v1351 = vpack.c.bf16 %v1350, %v1350
    %s1352 = scalar_lea.vmem [#allocation5], 448
    %v1353 = vld [vmem:[%s1352] sm:$0xf]
    %v1354 = vld [vmem:[%s1352 + $0x4] sm:$0xf]
    %v1355 = vld [vmem:[%s1352 + $0x8] sm:$0xf]
    %v1356 = vld [vmem:[%s1352 + $0xc] sm:$0xf]
    %v1357 = vld [vmem:[%s1352 + $0x10] sm:$0xf]
    %v1358 = vld [vmem:[%s1352 + $0x14] sm:$0xf]
    %v1359 = vld [vmem:[%s1352 + $0x18] sm:$0xf]
    %v1360 = vld [vmem:[%s1352 + $0x1c] sm:$0xf]
    %v1361 = vld [vmem:[%s1352 + $0x20] sm:$0xf]
    %v1362 = vld [vmem:[%s1352 + $0x24] sm:$0xf]
    %v1363 = vld [vmem:[%s1352 + $0x28] sm:$0xf]
    %v1364 = vld [vmem:[%s1352 + $0x2c] sm:$0xf]
    %v1365 = vld [vmem:[%s1352 + $0x30] sm:$0xf]
    %v1366 = vld [vmem:[%s1352 + $0x34] sm:$0xf]
    %v1367 = vld [vmem:[%s1352 + $0x38] sm:$0xf]
    %v1368 = vld [vmem:[%s1352 + $0x3c] sm:$0xf]
    %s1369 = scalar_lea.vmem %s4, 7
    %v1370 = vld [vmem:[%s1369] sm:$0x1]
    %v1372 = vlaneseq
    %v1373 = vshrl.u32 %v1372, 7
    %v1374 = vsub.s32 0, %v1373
    %v1375 = vrot.slane %v1370, %v1374
    %v1393 = vunpack.c.l.b16 %v1353
    %v1394 = vunpack.c.l.b16 %v1354
    %v1395 = vunpack.c.l.b16 %v1355
    %v1396 = vunpack.c.l.b16 %v1356
    %v1397 = vunpack.c.l.b16 %v1357
    %v1398 = vunpack.c.l.b16 %v1358
    %v1399 = vunpack.c.l.b16 %v1359
    %v1400 = vunpack.c.l.b16 %v1360
    %v1401 = vunpack.c.l.b16 %v1361
    %v1402 = vunpack.c.l.b16 %v1362
    %v1403 = vunpack.c.l.b16 %v1363
    %v1404 = vunpack.c.l.b16 %v1364
    %v1405 = vunpack.c.l.b16 %v1365
    %v1406 = vunpack.c.l.b16 %v1366
    %v1407 = vunpack.c.l.b16 %v1367
    %v1408 = vunpack.c.l.b16 %v1368
    %v1409 = vpack.c.b16 %v1394, %v1393
    %v1410 = vpack.c.b16 %v1396, %v1395
    %v1411 = vpack.c.b16 %v1398, %v1397
    %v1412 = vpack.c.b16 %v1400, %v1399
    %v1413 = vpack.c.b16 %v1402, %v1401
    %v1414 = vpack.c.b16 %v1404, %v1403
    %v1415 = vpack.c.b16 %v1406, %v1405
    %v1416 = vpack.c.b16 %v1408, %v1407
    %1425 = vmatprep.subr.bf16.mxu0 0
    %1426 = vmatpush1.bf16.msra.mxu0 %v1409
    %1427 = vmatprep.subr.bf16.mxu0 0
    %1428 = vmatpush1.bf16.msra.mxu0 %v1410
    %1429 = vmatprep.subr.bf16.mxu0 0
    %1430 = vmatpush1.bf16.msra.mxu0 %v1411
    %1431 = vmatprep.subr.bf16.mxu0 0
    %1432 = vmatpush1.bf16.msra.mxu0 %v1412
    %1433 = vmatprep.subr.bf16.mxu0 0
    %1434 = vmatpush1.bf16.msra.mxu0 %v1413
    %1435 = vmatprep.subr.bf16.mxu0 0
    %1436 = vmatpush1.bf16.msra.mxu0 %v1414
    %1437 = vmatprep.subr.bf16.mxu0 0
    %1438 = vmatpush1.bf16.msra.mxu0 %v1415
    %1439 = vmatprep.subr.bf16.mxu0 0
    %1440 = vmatpush1.bf16.msra.mxu0 %v1416
    %1441 = vmatprep.subr.bf16.mxu0 0
    %1442 = vmatpush1.bf16.msra.mxu0 0
    %1443 = vmatprep.subr.bf16.mxu0 0
    %1444 = vmatpush1.bf16.msra.mxu0 0
    %1445 = vmatprep.subr.bf16.mxu0 0
    %1446 = vmatpush1.bf16.msra.mxu0 0
    %1447 = vmatprep.subr.bf16.mxu0 0
    %1448 = vmatpush1.bf16.msra.mxu0 0
    %1449 = vmatprep.subr.bf16.mxu0 0
    %1450 = vmatpush1.bf16.msra.mxu0 0
    %1451 = vmatprep.subr.bf16.mxu0 0
    %1452 = vmatpush1.bf16.msra.mxu0 0
    %1453 = vmatprep.subr.bf16.mxu0 0
    %1454 = vmatpush1.bf16.msra.mxu0 0
    %1455 = vmatprep.subr.bf16.mxu0 0
    %1456 = vmatpush1.bf16.msra.mxu0 0
    %1457 = vmatprep.mubr.bf16.mxu0 0
    %1458 = vmatmul.mubr.bf16.gmra.mrb[0].mxu0 %v1351
    %v1459 = vpop.f32.mrb[0].mxu0
    %v1460 = vadd.f32 %v1375, %v1459
    %v1461 = vpop.f32.mrb[0].mxu0
    %v1462 = vpop.f32.mrb[0].mxu0
    %v1463 = vpop.f32.mrb[0].mxu0
    %1464 = vdwg.mxu0
    %v1465 = vmax.f32 %v1460, 0.0
    %v1466 = vpack.c.bf16 %v1465, %v1465
    %s1467 = scalar_lea.vmem [#allocation5], 512
    %v1468 = vld [vmem:[%s1467] sm:$0xf]
    %v1469 = vld [vmem:[%s1467 + $0x4] sm:$0xf]
    %v1470 = vld [vmem:[%s1467 + $0x8] sm:$0xf]
    %v1471 = vld [vmem:[%s1467 + $0xc] sm:$0xf]
    %v1472 = vld [vmem:[%s1467 + $0x10] sm:$0xf]
    %v1473 = vld [vmem:[%s1467 + $0x14] sm:$0xf]
    %v1474 = vld [vmem:[%s1467 + $0x18] sm:$0xf]
    %v1475 = vld [vmem:[%s1467 + $0x1c] sm:$0xf]
    %v1476 = vld [vmem:[%s1467 + $0x20] sm:$0xf]
    %v1477 = vld [vmem:[%s1467 + $0x24] sm:$0xf]
    %v1478 = vld [vmem:[%s1467 + $0x28] sm:$0xf]
    %v1479 = vld [vmem:[%s1467 + $0x2c] sm:$0xf]
    %v1480 = vld [vmem:[%s1467 + $0x30] sm:$0xf]
    %v1481 = vld [vmem:[%s1467 + $0x34] sm:$0xf]
    %v1482 = vld [vmem:[%s1467 + $0x38] sm:$0xf]
    %v1483 = vld [vmem:[%s1467 + $0x3c] sm:$0xf]
    %s1484 = scalar_lea.vmem %s4, 8
    %v1485 = vld [vmem:[%s1484] sm:$0x1]
    %v1487 = vlaneseq
    %v1488 = vshrl.u32 %v1487, 7
    %v1489 = vsub.s32 0, %v1488
    %v1490 = vrot.slane %v1485, %v1489
    %v1508 = vunpack.c.l.b16 %v1468
    %v1509 = vunpack.c.l.b16 %v1469
    %v1510 = vunpack.c.l.b16 %v1470
    %v1511 = vunpack.c.l.b16 %v1471
    %v1512 = vunpack.c.l.b16 %v1472
    %v1513 = vunpack.c.l.b16 %v1473
    %v1514 = vunpack.c.l.b16 %v1474
    %v1515 = vunpack.c.l.b16 %v1475
    %v1516 = vunpack.c.l.b16 %v1476
    %v1517 = vunpack.c.l.b16 %v1477
    %v1518 = vunpack.c.l.b16 %v1478
    %v1519 = vunpack.c.l.b16 %v1479
    %v1520 = vunpack.c.l.b16 %v1480
    %v1521 = vunpack.c.l.b16 %v1481
    %v1522 = vunpack.c.l.b16 %v1482
    %v1523 = vunpack.c.l.b16 %v1483
    %v1524 = vpack.c.b16 %v1509, %v1508
    %v1525 = vpack.c.b16 %v1511, %v1510
    %v1526 = vpack.c.b16 %v1513, %v1512
    %v1527 = vpack.c.b16 %v1515, %v1514
    %v1528 = vpack.c.b16 %v1517, %v1516
    %v1529 = vpack.c.b16 %v1519, %v1518
    %v1530 = vpack.c.b16 %v1521, %v1520
    %v1531 = vpack.c.b16 %v1523, %v1522
    %1540 = vmatprep.subr.bf16.mxu0 0
    %1541 = vmatpush1.bf16.msra.mxu0 %v1524
    %1542 = vmatprep.subr.bf16.mxu0 0
    %1543 = vmatpush1.bf16.msra.mxu0 %v1525
    %1544 = vmatprep.subr.bf16.mxu0 0
    %1545 = vmatpush1.bf16.msra.mxu0 %v1526
    %1546 = vmatprep.subr.bf16.mxu0 0
    %1547 = vmatpush1.bf16.msra.mxu0 %v1527
    %1548 = vmatprep.subr.bf16.mxu0 0
    %1549 = vmatpush1.bf16.msra.mxu0 %v1528
    %1550 = vmatprep.subr.bf16.mxu0 0
    %1551 = vmatpush1.bf16.msra.mxu0 %v1529
    %1552 = vmatprep.subr.bf16.mxu0 0
    %1553 = vmatpush1.bf16.msra.mxu0 %v1530
    %1554 = vmatprep.subr.bf16.mxu0 0
    %1555 = vmatpush1.bf16.msra.mxu0 %v1531
    %1556 = vmatprep.subr.bf16.mxu0 0
    %1557 = vmatpush1.bf16.msra.mxu0 0
    %1558 = vmatprep.subr.bf16.mxu0 0
    %1559 = vmatpush1.bf16.msra.mxu0 0
    %1560 = vmatprep.subr.bf16.mxu0 0
    %1561 = vmatpush1.bf16.msra.mxu0 0
    %1562 = vmatprep.subr.bf16.mxu0 0
    %1563 = vmatpush1.bf16.msra.mxu0 0
    %1564 = vmatprep.subr.bf16.mxu0 0
    %1565 = vmatpush1.bf16.msra.mxu0 0
    %1566 = vmatprep.subr.bf16.mxu0 0
    %1567 = vmatpush1.bf16.msra.mxu0 0
    %1568 = vmatprep.subr.bf16.mxu0 0
    %1569 = vmatpush1.bf16.msra.mxu0 0
    %1570 = vmatprep.subr.bf16.mxu0 0
    %1571 = vmatpush1.bf16.msra.mxu0 0
    %1572 = vmatprep.mubr.bf16.mxu0 0
    %1573 = vmatmul.mubr.bf16.gmra.mrb[0].mxu0 %v1466
    %v1574 = vpop.f32.mrb[0].mxu0
    %v1575 = vadd.f32 %v1490, %v1574
    %v1576 = vpop.f32.mrb[0].mxu0
    %v1577 = vpop.f32.mrb[0].mxu0
    %v1578 = vpop.f32.mrb[0].mxu0
    %1579 = vdwg.mxu0
    %v1580 = vmax.f32 %v1575, 0.0
    %v1581 = vpack.c.bf16 %v1580, %v1580
    %s1582 = scalar_lea.vmem [#allocation7], 128
    %v1583 = vld [vmem:[%s1582] sm:$0xf]
    %v1584 = vld [vmem:[%s1582 + $0x4] sm:$0xf]
    %v1585 = vld [vmem:[%s1582 + $0x8] sm:$0xf]
    %v1586 = vld [vmem:[%s1582 + $0xc] sm:$0xf]
    %v1587 = vld [vmem:[%s1582 + $0x10] sm:$0xf]
    %v1588 = vld [vmem:[%s1582 + $0x14] sm:$0xf]
    %v1589 = vld [vmem:[%s1582 + $0x18] sm:$0xf]
    %v1590 = vld [vmem:[%s1582 + $0x1c] sm:$0xf]
    %v1591 = vld [vmem:[%s1582 + $0x20] sm:$0xf]
    %v1592 = vld [vmem:[%s1582 + $0x24] sm:$0xf]
    %v1593 = vld [vmem:[%s1582 + $0x28] sm:$0xf]
    %v1594 = vld [vmem:[%s1582 + $0x2c] sm:$0xf]
    %v1595 = vld [vmem:[%s1582 + $0x30] sm:$0xf]
    %v1596 = vld [vmem:[%s1582 + $0x34] sm:$0xf]
    %v1597 = vld [vmem:[%s1582 + $0x38] sm:$0xf]
    %v1598 = vld [vmem:[%s1582 + $0x3c] sm:$0xf]
    %v1615 = vunpack.c.l.b16 %v1583
    %v1616 = vunpack.c.l.b16 %v1584
    %v1617 = vunpack.c.l.b16 %v1585
    %v1618 = vunpack.c.l.b16 %v1586
    %v1619 = vunpack.c.l.b16 %v1587
    %v1620 = vunpack.c.l.b16 %v1588
    %v1621 = vunpack.c.l.b16 %v1589
    %v1622 = vunpack.c.l.b16 %v1590
    %v1623 = vunpack.c.l.b16 %v1591
    %v1624 = vunpack.c.l.b16 %v1592
    %v1625 = vunpack.c.l.b16 %v1593
    %v1626 = vunpack.c.l.b16 %v1594
    %v1627 = vunpack.c.l.b16 %v1595
    %v1628 = vunpack.c.l.b16 %v1596
    %v1629 = vunpack.c.l.b16 %v1597
    %v1630 = vunpack.c.l.b16 %v1598
    %v1631 = vpack.c.b16 %v1616, %v1615
    %v1632 = vpack.c.b16 %v1618, %v1617
    %v1633 = vpack.c.b16 %v1620, %v1619
    %v1634 = vpack.c.b16 %v1622, %v1621
    %v1635 = vpack.c.b16 %v1624, %v1623
    %v1636 = vpack.c.b16 %v1626, %v1625
    %v1637 = vpack.c.b16 %v1628, %v1627
    %v1638 = vpack.c.b16 %v1630, %v1629
    %1647 = vmatprep.subr.bf16.mxu0 0
    %1648 = vmatpush1.bf16.msra.mxu0 %v1631
    %1649 = vmatprep.subr.bf16.mxu0 0
    %1650 = vmatpush1.bf16.msra.mxu0 %v1632
    %1651 = vmatprep.subr.bf16.mxu0 0
    %1652 = vmatpush1.bf16.msra.mxu0 %v1633
    %1653 = vmatprep.subr.bf16.mxu0 0
    %1654 = vmatpush1.bf16.msra.mxu0 %v1634
    %1655 = vmatprep.subr.bf16.mxu0 0
    %1656 = vmatpush1.bf16.msra.mxu0 %v1635
    %1657 = vmatprep.subr.bf16.mxu0 0
    %1658 = vmatpush1.bf16.msra.mxu0 %v1636
    %1659 = vmatprep.subr.bf16.mxu0 0
    %1660 = vmatpush1.bf16.msra.mxu0 %v1637
    %1661 = vmatprep.subr.bf16.mxu0 0
    %1662 = vmatpush1.bf16.msra.mxu0 %v1638
    %1663 = vmatprep.subr.bf16.mxu0 0
    %1664 = vmatpush1.bf16.msra.mxu0 0
    %1665 = vmatprep.subr.bf16.mxu0 0
    %1666 = vmatpush1.bf16.msra.mxu0 0
    %1667 = vmatprep.subr.bf16.mxu0 0
    %1668 = vmatpush1.bf16.msra.mxu0 0
    %1669 = vmatprep.subr.bf16.mxu0 0
    %1670 = vmatpush1.bf16.msra.mxu0 0
    %1671 = vmatprep.subr.bf16.mxu0 0
    %1672 = vmatpush1.bf16.msra.mxu0 0
    %1673 = vmatprep.subr.bf16.mxu0 0
    %1674 = vmatpush1.bf16.msra.mxu0 0
    %1675 = vmatprep.subr.bf16.mxu0 0
    %1676 = vmatpush1.bf16.msra.mxu0 0
    %1677 = vmatprep.subr.bf16.mxu0 0
    %1678 = vmatpush1.bf16.msra.mxu0 0
    %1679 = vmatprep.mubr.bf16.mxu0 0
    %1680 = vmatmul.mubr.bf16.gmra.mrb[0].mxu0 %v1581
    %v1681 = vpop.f32.mrb[0].mxu0
    %v1682 = vadd.f32 0.0, %v1681
    %v1683 = vpop.f32.mrb[0].mxu0
    %v1684 = vpop.f32.mrb[0].mxu0
    %v1685 = vpop.f32.mrb[0].mxu0
    %1686 = vdwg.mxu0
    %v1687 = vld [vmem:[#allocation2] sm:$0xff]
    %v1688 = vadd.f32 %v1687, %v1682
    %1689 = vst [vmem:[#allocation2] sm:$0xff] %v1688
    %v1690 = vld [vmem:[#allocation2] sm:$0xff]
    %v1691 = vld [vmem:[%s6] sm:$0x1]
    %v1693 = vlaneseq
    %v1694 = vshrl.u32 %v1693, 7
    %v1695 = vsub.s32 0, %v1694
    %v1696 = vrot.slane %v1691, %v1695
    %v1698 = vadd.f32 %v1690, %v1696
    %v1699 = vmax.f32 %v1698, 0.0
    %v1700 = vpack.c.bf16 %v1699, %v1699
    %v1701 = vld [vmem:[#allocation8] sm:$0xf]
    %v1702 = vld [vmem:[#allocation8 + $0x4] sm:$0xf]
    %v1703 = vld [vmem:[#allocation8 + $0x8] sm:$0xf]
    %v1704 = vld [vmem:[#allocation8 + $0xc] sm:$0xf]
    %v1705 = vld [vmem:[#allocation8 + $0x10] sm:$0xf]
    %v1706 = vld [vmem:[#allocation8 + $0x14] sm:$0xf]
    %v1707 = vld [vmem:[#allocation8 + $0x18] sm:$0xf]
    %v1708 = vld [vmem:[#allocation8 + $0x1c] sm:$0xf]
    %v1709 = vld [vmem:[#allocation8 + $0x20] sm:$0xf]
    %v1710 = vld [vmem:[#allocation8 + $0x24] sm:$0xf]
    %v1711 = vld [vmem:[#allocation8 + $0x28] sm:$0xf]
    %v1712 = vld [vmem:[#allocation8 + $0x2c] sm:$0xf]
    %v1713 = vld [vmem:[#allocation8 + $0x30] sm:$0xf]
    %v1714 = vld [vmem:[#allocation8 + $0x34] sm:$0xf]
    %v1715 = vld [vmem:[#allocation8 + $0x38] sm:$0xf]
    %v1716 = vld [vmem:[#allocation8 + $0x3c] sm:$0xf]
    %v1717 = vld [vmem:[%s8] sm:$0x1]
    %v1719 = vlaneseq
    %v1720 = vshrl.u32 %v1719, 7
    %v1721 = vsub.s32 0, %v1720
    %v1722 = vrot.slane %v1717, %v1721
    %v1740 = vunpack.c.l.b16 %v1701
    %v1741 = vunpack.c.l.b16 %v1702
    %v1742 = vunpack.c.l.b16 %v1703
    %v1743 = vunpack.c.l.b16 %v1704
    %v1744 = vunpack.c.l.b16 %v1705
    %v1745 = vunpack.c.l.b16 %v1706
    %v1746 = vunpack.c.l.b16 %v1707
    %v1747 = vunpack.c.l.b16 %v1708
    %v1748 = vunpack.c.l.b16 %v1709
    %v1749 = vunpack.c.l.b16 %v1710
    %v1750 = vunpack.c.l.b16 %v1711
    %v1751 = vunpack.c.l.b16 %v1712
    %v1752 = vunpack.c.l.b16 %v1713
    %v1753 = vunpack.c.l.b16 %v1714
    %v1754 = vunpack.c.l.b16 %v1715
    %v1755 = vunpack.c.l.b16 %v1716
    %v1756 = vpack.c.b16 %v1741, %v1740
    %v1757 = vpack.c.b16 %v1743, %v1742
    %v1758 = vpack.c.b16 %v1745, %v1744
    %v1759 = vpack.c.b16 %v1747, %v1746
    %v1760 = vpack.c.b16 %v1749, %v1748
    %v1761 = vpack.c.b16 %v1751, %v1750
    %v1762 = vpack.c.b16 %v1753, %v1752
    %v1763 = vpack.c.b16 %v1755, %v1754
    %1772 = vmatprep.subr.bf16.mxu0 0
    %1773 = vmatpush1.bf16.msra.mxu0 %v1756
    %1774 = vmatprep.subr.bf16.mxu0 0
    %1775 = vmatpush1.bf16.msra.mxu0 %v1757
    %1776 = vmatprep.subr.bf16.mxu0 0
    %1777 = vmatpush1.bf16.msra.mxu0 %v1758
    %1778 = vmatprep.subr.bf16.mxu0 0
    %1779 = vmatpush1.bf16.msra.mxu0 %v1759
    %1780 = vmatprep.subr.bf16.mxu0 0
    %1781 = vmatpush1.bf16.msra.mxu0 %v1760
    %1782 = vmatprep.subr.bf16.mxu0 0
    %1783 = vmatpush1.bf16.msra.mxu0 %v1761
    %1784 = vmatprep.subr.bf16.mxu0 0
    %1785 = vmatpush1.bf16.msra.mxu0 %v1762
    %1786 = vmatprep.subr.bf16.mxu0 0
    %1787 = vmatpush1.bf16.msra.mxu0 %v1763
    %1788 = vmatprep.subr.bf16.mxu0 0
    %1789 = vmatpush1.bf16.msra.mxu0 0
    %1790 = vmatprep.subr.bf16.mxu0 0
    %1791 = vmatpush1.bf16.msra.mxu0 0
    %1792 = vmatprep.subr.bf16.mxu0 0
    %1793 = vmatpush1.bf16.msra.mxu0 0
    %1794 = vmatprep.subr.bf16.mxu0 0
    %1795 = vmatpush1.bf16.msra.mxu0 0
    %1796 = vmatprep.subr.bf16.mxu0 0
    %1797 = vmatpush1.bf16.msra.mxu0 0
    %1798 = vmatprep.subr.bf16.mxu0 0
    %1799 = vmatpush1.bf16.msra.mxu0 0
    %1800 = vmatprep.subr.bf16.mxu0 0
    %1801 = vmatpush1.bf16.msra.mxu0 0
    %1802 = vmatprep.subr.bf16.mxu0 0
    %1803 = vmatpush1.bf16.msra.mxu0 0
    %1804 = vmatprep.mubr.bf16.mxu0 0
    %1805 = vmatmul.mubr.bf16.gmra.mrb[0].mxu0 %v1700
    %v1806 = vpop.f32.mrb[0].mxu0
    %v1807 = vadd.f32 %v1722, %v1806
    %v1808 = vpop.f32.mrb[0].mxu0
    %v1809 = vpop.f32.mrb[0].mxu0
    %v1810 = vpop.f32.mrb[0].mxu0
    %1811 = vdwg.mxu0
    %v1812 = vmax.f32 %v1807, 0.0
    %v1813 = vpack.c.bf16 %v1812, %v1812
    %s1814 = scalar_lea.vmem [#allocation8], 64
    %v1815 = vld [vmem:[%s1814] sm:$0xf]
    %v1816 = vld [vmem:[%s1814 + $0x4] sm:$0xf]
    %v1817 = vld [vmem:[%s1814 + $0x8] sm:$0xf]
    %v1818 = vld [vmem:[%s1814 + $0xc] sm:$0xf]
    %v1819 = vld [vmem:[%s1814 + $0x10] sm:$0xf]
    %v1820 = vld [vmem:[%s1814 + $0x14] sm:$0xf]
    %v1821 = vld [vmem:[%s1814 + $0x18] sm:$0xf]
    %v1822 = vld [vmem:[%s1814 + $0x1c] sm:$0xf]
    %v1823 = vld [vmem:[%s1814 + $0x20] sm:$0xf]
    %v1824 = vld [vmem:[%s1814 + $0x24] sm:$0xf]
    %v1825 = vld [vmem:[%s1814 + $0x28] sm:$0xf]
    %v1826 = vld [vmem:[%s1814 + $0x2c] sm:$0xf]
    %v1827 = vld [vmem:[%s1814 + $0x30] sm:$0xf]
    %v1828 = vld [vmem:[%s1814 + $0x34] sm:$0xf]
    %v1829 = vld [vmem:[%s1814 + $0x38] sm:$0xf]
    %v1830 = vld [vmem:[%s1814 + $0x3c] sm:$0xf]
    %s1831 = scalar_lea.vmem %s8, 1
    %v1832 = vld [vmem:[%s1831] sm:$0x1]
    %v1834 = vlaneseq
    %v1835 = vshrl.u32 %v1834, 7
    %v1836 = vsub.s32 0, %v1835
    %v1837 = vrot.slane %v1832, %v1836
    %v1855 = vunpack.c.l.b16 %v1815
    %v1856 = vunpack.c.l.b16 %v1816
    %v1857 = vunpack.c.l.b16 %v1817
    %v1858 = vunpack.c.l.b16 %v1818
    %v1859 = vunpack.c.l.b16 %v1819
    %v1860 = vunpack.c.l.b16 %v1820
    %v1861 = vunpack.c.l.b16 %v1821
    %v1862 = vunpack.c.l.b16 %v1822
    %v1863 = vunpack.c.l.b16 %v1823
    %v1864 = vunpack.c.l.b16 %v1824
    %v1865 = vunpack.c.l.b16 %v1825
    %v1866 = vunpack.c.l.b16 %v1826
    %v1867 = vunpack.c.l.b16 %v1827
    %v1868 = vunpack.c.l.b16 %v1828
    %v1869 = vunpack.c.l.b16 %v1829
    %v1870 = vunpack.c.l.b16 %v1830
    %v1871 = vpack.c.b16 %v1856, %v1855
    %v1872 = vpack.c.b16 %v1858, %v1857
    %v1873 = vpack.c.b16 %v1860, %v1859
    %v1874 = vpack.c.b16 %v1862, %v1861
    %v1875 = vpack.c.b16 %v1864, %v1863
    %v1876 = vpack.c.b16 %v1866, %v1865
    %v1877 = vpack.c.b16 %v1868, %v1867
    %v1878 = vpack.c.b16 %v1870, %v1869
    %1887 = vmatprep.subr.bf16.mxu0 0
    %1888 = vmatpush1.bf16.msra.mxu0 %v1871
    %1889 = vmatprep.subr.bf16.mxu0 0
    %1890 = vmatpush1.bf16.msra.mxu0 %v1872
    %1891 = vmatprep.subr.bf16.mxu0 0
    %1892 = vmatpush1.bf16.msra.mxu0 %v1873
    %1893 = vmatprep.subr.bf16.mxu0 0
    %1894 = vmatpush1.bf16.msra.mxu0 %v1874
    %1895 = vmatprep.subr.bf16.mxu0 0
    %1896 = vmatpush1.bf16.msra.mxu0 %v1875
    %1897 = vmatprep.subr.bf16.mxu0 0
    %1898 = vmatpush1.bf16.msra.mxu0 %v1876
    %1899 = vmatprep.subr.bf16.mxu0 0
    %1900 = vmatpush1.bf16.msra.mxu0 %v1877
    %1901 = vmatprep.subr.bf16.mxu0 0
    %1902 = vmatpush1.bf16.msra.mxu0 %v1878
    %1903 = vmatprep.subr.bf16.mxu0 0
    %1904 = vmatpush1.bf16.msra.mxu0 0
    %1905 = vmatprep.subr.bf16.mxu0 0
    %1906 = vmatpush1.bf16.msra.mxu0 0
    %1907 = vmatprep.subr.bf16.mxu0 0
    %1908 = vmatpush1.bf16.msra.mxu0 0
    %1909 = vmatprep.subr.bf16.mxu0 0
    %1910 = vmatpush1.bf16.msra.mxu0 0
    %1911 = vmatprep.subr.bf16.mxu0 0
    %1912 = vmatpush1.bf16.msra.mxu0 0
    %1913 = vmatprep.subr.bf16.mxu0 0
    %1914 = vmatpush1.bf16.msra.mxu0 0
    %1915 = vmatprep.subr.bf16.mxu0 0
    %1916 = vmatpush1.bf16.msra.mxu0 0
    %1917 = vmatprep.subr.bf16.mxu0 0
    %1918 = vmatpush1.bf16.msra.mxu0 0
    %1919 = vmatprep.mubr.bf16.mxu0 0
    %1920 = vmatmul.mubr.bf16.gmra.mrb[0].mxu0 %v1813
    %v1921 = vpop.f32.mrb[0].mxu0
    %v1922 = vadd.f32 %v1837, %v1921
    %v1923 = vpop.f32.mrb[0].mxu0
    %v1924 = vpop.f32.mrb[0].mxu0
    %v1925 = vpop.f32.mrb[0].mxu0
    %1926 = vdwg.mxu0
    %v1927 = vmax.f32 %v1922, 0.0
    %v1928 = vpack.c.bf16 %v1927, %v1927
    %s1929 = scalar_lea.vmem [#allocation8], 128
    %v1930 = vld [vmem:[%s1929] sm:$0xf]
    %v1931 = vld [vmem:[%s1929 + $0x4] sm:$0xf]
    %v1932 = vld [vmem:[%s1929 + $0x8] sm:$0xf]
    %v1933 = vld [vmem:[%s1929 + $0xc] sm:$0xf]
    %v1934 = vld [vmem:[%s1929 + $0x10] sm:$0xf]
    %v1935 = vld [vmem:[%s1929 + $0x14] sm:$0xf]
    %v1936 = vld [vmem:[%s1929 + $0x18] sm:$0xf]
    %v1937 = vld [vmem:[%s1929 + $0x1c] sm:$0xf]
    %v1938 = vld [vmem:[%s1929 + $0x20] sm:$0xf]
    %v1939 = vld [vmem:[%s1929 + $0x24] sm:$0xf]
    %v1940 = vld [vmem:[%s1929 + $0x28] sm:$0xf]
    %v1941 = vld [vmem:[%s1929 + $0x2c] sm:$0xf]
    %v1942 = vld [vmem:[%s1929 + $0x30] sm:$0xf]
    %v1943 = vld [vmem:[%s1929 + $0x34] sm:$0xf]
    %v1944 = vld [vmem:[%s1929 + $0x38] sm:$0xf]
    %v1945 = vld [vmem:[%s1929 + $0x3c] sm:$0xf]
    %s1946 = scalar_lea.vmem %s8, 2
    %v1947 = vld [vmem:[%s1946] sm:$0x1]
    %v1949 = vlaneseq
    %v1950 = vshrl.u32 %v1949, 7
    %v1951 = vsub.s32 0, %v1950
    %v1952 = vrot.slane %v1947, %v1951
    %v1970 = vunpack.c.l.b16 %v1930
    %v1971 = vunpack.c.l.b16 %v1931
    %v1972 = vunpack.c.l.b16 %v1932
    %v1973 = vunpack.c.l.b16 %v1933
    %v1974 = vunpack.c.l.b16 %v1934
    %v1975 = vunpack.c.l.b16 %v1935
    %v1976 = vunpack.c.l.b16 %v1936
    %v1977 = vunpack.c.l.b16 %v1937
    %v1978 = vunpack.c.l.b16 %v1938
    %v1979 = vunpack.c.l.b16 %v1939
    %v1980 = vunpack.c.l.b16 %v1940
    %v1981 = vunpack.c.l.b16 %v1941
    %v1982 = vunpack.c.l.b16 %v1942
    %v1983 = vunpack.c.l.b16 %v1943
    %v1984 = vunpack.c.l.b16 %v1944
    %v1985 = vunpack.c.l.b16 %v1945
    %v1986 = vpack.c.b16 %v1971, %v1970
    %v1987 = vpack.c.b16 %v1973, %v1972
    %v1988 = vpack.c.b16 %v1975, %v1974
    %v1989 = vpack.c.b16 %v1977, %v1976
    %v1990 = vpack.c.b16 %v1979, %v1978
    %v1991 = vpack.c.b16 %v1981, %v1980
    %v1992 = vpack.c.b16 %v1983, %v1982
    %v1993 = vpack.c.b16 %v1985, %v1984
    %2002 = vmatprep.subr.bf16.mxu0 0
    %2003 = vmatpush1.bf16.msra.mxu0 %v1986
    %2004 = vmatprep.subr.bf16.mxu0 0
    %2005 = vmatpush1.bf16.msra.mxu0 %v1987
    %2006 = vmatprep.subr.bf16.mxu0 0
    %2007 = vmatpush1.bf16.msra.mxu0 %v1988
    %2008 = vmatprep.subr.bf16.mxu0 0
    %2009 = vmatpush1.bf16.msra.mxu0 %v1989
    %2010 = vmatprep.subr.bf16.mxu0 0
    %2011 = vmatpush1.bf16.msra.mxu0 %v1990
    %2012 = vmatprep.subr.bf16.mxu0 0
    %2013 = vmatpush1.bf16.msra.mxu0 %v1991
    %2014 = vmatprep.subr.bf16.mxu0 0
    %2015 = vmatpush1.bf16.msra.mxu0 %v1992
    %2016 = vmatprep.subr.bf16.mxu0 0
    %2017 = vmatpush1.bf16.msra.mxu0 %v1993
    %2018 = vmatprep.subr.bf16.mxu0 0
    %2019 = vmatpush1.bf16.msra.mxu0 0
    %2020 = vmatprep.subr.bf16.mxu0 0
    %2021 = vmatpush1.bf16.msra.mxu0 0
    %2022 = vmatprep.subr.bf16.mxu0 0
    %2023 = vmatpush1.bf16.msra.mxu0 0
    %2024 = vmatprep.subr.bf16.mxu0 0
    %2025 = vmatpush1.bf16.msra.mxu0 0
    %2026 = vmatprep.subr.bf16.mxu0 0
    %2027 = vmatpush1.bf16.msra.mxu0 0
    %2028 = vmatprep.subr.bf16.mxu0 0
    %2029 = vmatpush1.bf16.msra.mxu0 0
    %2030 = vmatprep.subr.bf16.mxu0 0
    %2031 = vmatpush1.bf16.msra.mxu0 0
    %2032 = vmatprep.subr.bf16.mxu0 0
    %2033 = vmatpush1.bf16.msra.mxu0 0
    %2034 = vmatprep.mubr.bf16.mxu0 0
    %2035 = vmatmul.mubr.bf16.gmra.mrb[0].mxu0 %v1928
    %v2036 = vpop.f32.mrb[0].mxu0
    %v2037 = vadd.f32 %v1952, %v2036
    %v2038 = vpop.f32.mrb[0].mxu0
    %v2039 = vpop.f32.mrb[0].mxu0
    %v2040 = vpop.f32.mrb[0].mxu0
    %2041 = vdwg.mxu0
    %v2042 = vmax.f32 %v2037, 0.0
    %v2043 = vpack.c.bf16 %v2042, %v2042
    %v2044 = vld [vmem:[#allocation10] sm:$0xf]
    %v2045 = vld [vmem:[#allocation10 + $0x4] sm:$0xf]
    %v2046 = vld [vmem:[#allocation10 + $0x8] sm:$0xf]
    %v2047 = vld [vmem:[#allocation10 + $0xc] sm:$0xf]
    %v2048 = vld [vmem:[#allocation10 + $0x10] sm:$0xf]
    %v2049 = vld [vmem:[#allocation10 + $0x14] sm:$0xf]
    %v2050 = vld [vmem:[#allocation10 + $0x18] sm:$0xf]
    %v2051 = vld [vmem:[#allocation10 + $0x1c] sm:$0xf]
    %v2052 = vld [vmem:[#allocation10 + $0x20] sm:$0xf]
    %v2053 = vld [vmem:[#allocation10 + $0x24] sm:$0xf]
    %v2054 = vld [vmem:[#allocation10 + $0x28] sm:$0xf]
    %v2055 = vld [vmem:[#allocation10 + $0x2c] sm:$0xf]
    %v2056 = vld [vmem:[#allocation10 + $0x30] sm:$0xf]
    %v2057 = vld [vmem:[#allocation10 + $0x34] sm:$0xf]
    %v2058 = vld [vmem:[#allocation10 + $0x38] sm:$0xf]
    %v2059 = vld [vmem:[#allocation10 + $0x3c] sm:$0xf]
    %v2060 = vld [vmem:[%s10] sm:$0x1]
    %v2062 = vlaneseq
    %v2063 = vshrl.u32 %v2062, 7
    %v2064 = vsub.s32 0, %v2063
    %v2065 = vrot.slane %v2060, %v2064
    %v2083 = vunpack.c.l.b16 %v2044
    %v2084 = vunpack.c.l.b16 %v2045
    %v2085 = vunpack.c.l.b16 %v2046
    %v2086 = vunpack.c.l.b16 %v2047
    %v2087 = vunpack.c.l.b16 %v2048
    %v2088 = vunpack.c.l.b16 %v2049
    %v2089 = vunpack.c.l.b16 %v2050
    %v2090 = vunpack.c.l.b16 %v2051
    %v2091 = vunpack.c.l.b16 %v2052
    %v2092 = vunpack.c.l.b16 %v2053
    %v2093 = vunpack.c.l.b16 %v2054
    %v2094 = vunpack.c.l.b16 %v2055
    %v2095 = vunpack.c.l.b16 %v2056
    %v2096 = vunpack.c.l.b16 %v2057
    %v2097 = vunpack.c.l.b16 %v2058
    %v2098 = vunpack.c.l.b16 %v2059
    %v2099 = vpack.c.b16 %v2084, %v2083
    %v2100 = vpack.c.b16 %v2086, %v2085
    %v2101 = vpack.c.b16 %v2088, %v2087
    %v2102 = vpack.c.b16 %v2090, %v2089
    %v2103 = vpack.c.b16 %v2092, %v2091
    %v2104 = vpack.c.b16 %v2094, %v2093
    %v2105 = vpack.c.b16 %v2096, %v2095
    %v2106 = vpack.c.b16 %v2098, %v2097
    %2115 = vmatprep.subr.bf16.mxu0 0
    %2116 = vmatpush1.bf16.msra.mxu0 %v2099
    %2117 = vmatprep.subr.bf16.mxu0 0
    %2118 = vmatpush1.bf16.msra.mxu0 %v2100
    %2119 = vmatprep.subr.bf16.mxu0 0
    %2120 = vmatpush1.bf16.msra.mxu0 %v2101
    %2121 = vmatprep.subr.bf16.mxu0 0
    %2122 = vmatpush1.bf16.msra.mxu0 %v2102
    %2123 = vmatprep.subr.bf16.mxu0 0
    %2124 = vmatpush1.bf16.msra.mxu0 %v2103
    %2125 = vmatprep.subr.bf16.mxu0 0
    %2126 = vmatpush1.bf16.msra.mxu0 %v2104
    %2127 = vmatprep.subr.bf16.mxu0 0
    %2128 = vmatpush1.bf16.msra.mxu0 %v2105
    %2129 = vmatprep.subr.bf16.mxu0 0
    %2130 = vmatpush1.bf16.msra.mxu0 %v2106
    %2131 = vmatprep.subr.bf16.mxu0 0
    %2132 = vmatpush1.bf16.msra.mxu0 0
    %2133 = vmatprep.subr.bf16.mxu0 0
    %2134 = vmatpush1.bf16.msra.mxu0 0
    %2135 = vmatprep.subr.bf16.mxu0 0
    %2136 = vmatpush1.bf16.msra.mxu0 0
    %2137 = vmatprep.subr.bf16.mxu0 0
    %2138 = vmatpush1.bf16.msra.mxu0 0
    %2139 = vmatprep.subr.bf16.mxu0 0
    %2140 = vmatpush1.bf16.msra.mxu0 0
    %2141 = vmatprep.subr.bf16.mxu0 0
    %2142 = vmatpush1.bf16.msra.mxu0 0
    %2143 = vmatprep.subr.bf16.mxu0 0
    %2144 = vmatpush1.bf16.msra.mxu0 0
    %2145 = vmatprep.subr.bf16.mxu0 0
    %2146 = vmatpush1.bf16.msra.mxu0 0
    %2147 = vmatprep.mubr.bf16.mxu0 0
    %2148 = vmatmul.mubr.bf16.gmra.mrb[0].mxu0 %v2043
    %v2149 = vpop.f32.mrb[0].mxu0
    %v2150 = vadd.f32 %v2065, %v2149
    %v2151 = vpop.f32.mrb[0].mxu0
    %v2152 = vpop.f32.mrb[0].mxu0
    %v2153 = vpop.f32.mrb[0].mxu0
    %2154 = vdwg.mxu0
    %v2155 = vmax.f32 %v2150, 0.0
    %2156 = vst [vmem:[%s11] sm:$0xff] %v2155
    // Predicated region
    $region66: #{nchannel_dense_embedding.1} parent=1 // pred_check
      _
    $region67: #{nchannel_dense_embedding.1} parent=1 // pred_check_branch
      %2158 = sbr.rel (0) target = $region69
    $region68: #{nchannel_dense_embedding.1} parent=1 // pred_region
      _
    $region69: #{nchannel_dense_embedding.1} parent=1 // pred_fallthru
      _
    // Predicated region
    $region70: #{nchannel_dense_embedding.1} parent=1 // pred_check
      _
    $region71: #{nchannel_dense_embedding.1} parent=1 // pred_check_branch
      %2160 = sbr.rel (0) target = $region73
    $region72: #{nchannel_dense_embedding.1} parent=1 // pred_region
      _
    $region73: #{nchannel_dense_embedding.1} parent=1 // pred_fallthru
      _
    %2161 = vsyncpa [#allocation4], 1
    %2162 = vsyncpa [#allocation6], 1
    %2163 = vsyncpa [#allocation9], 1

</llo_original>
